<compile_context>
chip_gen: v7x
topology: tpu7x:2x2x1
jax: 0.10.0
libtpu: 0.0.40
codegen_flags: <defaults>
</compile_context>

<pallas_src>
import functools

import jax
import jax.numpy as jnp
from jax.experimental import pallas as pl
from jax.experimental.pallas import tpu as pltpu

LANE = 128
SUBLANE = 8


def _round_up(x, m):
    return ((x + m - 1) // m) * m


def _sepconv_kernel(x_hbm, wdw_ref, wpw_ref, o_ref, buf_ref, sem_ref, *,
                    KH, KW, Ho_t, Wo_t, Cp, Coutp, R):
    # x_hbm:   (N, Hp, Wp, Cp)  full padded NHWC input, resident in HBM
    # wdw_ref: (KH, KW, Cp)     depthwise weights (VMEM-resident, constant map)
    # wpw_ref: (Cp, Coutp)      pointwise 1x1 weights (VMEM-resident)
    # o_ref:   (1, Ho_t, Wo_t, Coutp)   output row strip
    # buf_ref: (2, Ho_t+KH-1, Wp, Cp)   double-buffered input halo strips
    # sem_ref: DMA semaphores, one per buffer slot
    n = pl.program_id(0)
    r = pl.program_id(1)
    halo_h = Ho_t + KH - 1
    slot = r % 2

    def start_fetch(row_strip, sl):
        pltpu.make_async_copy(
            x_hbm.at[n, pl.ds(row_strip * Ho_t, halo_h)],
            buf_ref.at[sl],
            sem_ref.at[sl]).start()

    # Prime the pipeline at the first row strip of each batch element.
    @pl.when(r == 0)
    def _():
        start_fetch(0, 0)

    # Wait for the current strip (started either above or by the previous step).
    pltpu.make_async_copy(
        x_hbm.at[n, pl.ds(r * Ho_t, halo_h)],
        buf_ref.at[slot],
        sem_ref.at[slot]).wait()

    # Prefetch the next strip of this batch element into the other slot so the
    # HBM read overlaps this strip's compute.  (Trace-time guard: no dead DMA
    # code when there is only one strip.)
    if R > 1:
        @pl.when(r + 1 < R)
        def _():
            start_fetch(r + 1, 1 - slot)

    # Depthwise conv: register accumulation in f32 across all KH*KW taps.
    # Each tap is a direct VMEM window load (no acc_ref read-modify-write).
    acc = None
    for kh in range(KH):
        for kw in range(KW):
            win = buf_ref[pl.ds(slot, 1), pl.ds(kh, Ho_t), pl.ds(kw, Wo_t), :]
            prod = (win * wdw_ref[kh, kw, :]).astype(jnp.float32)
            acc = prod if acc is None else acc + prod
    # acc: (1, Ho_t, Wo_t, Cp) f32

    # Pointwise 1x1 conv == (Ho_t*Wo_t, Cp) @ (Cp, Coutp) on the MXU.
    # Wo_t is a multiple of 8, so this reshape is layout-free.
    y = jnp.dot(acc.reshape(Ho_t * Wo_t, Cp).astype(wpw_ref.dtype),
                wpw_ref[...],
                preferred_element_type=jnp.float32)
    o_ref[...] = y.reshape(1, Ho_t, Wo_t, Coutp).astype(o_ref.dtype)


def separable_conv2d(x_nchw, w_dw, w_pw, *, padding=0, block_h=None,
                     mxu_dtype=jnp.bfloat16,
                     vmem_budget=32 * 1024 * 1024):
    """x_nchw: (N, C, H, W); w_dw: (C, 1, KH, KW); w_pw: (Cout, C, 1, 1) (torch layouts).

    mxu_dtype: dtype for the pointwise matmul operands (f32 accumulate is kept
    via preferred_element_type).  None -> use the input dtype (full precision).
    """
    N, C, H, W = x_nchw.shape
    KH, KW = w_dw.shape[2], w_dw.shape[3]
    Cout = w_pw.shape[0]
    Ho = H + 2 * padding - KH + 1
    Wo = W + 2 * padding - KW + 1
    assert Ho > 0 and Wo > 0

    Cp = _round_up(C, LANE)            # lane-dense depthwise channels
    Coutp = _round_up(Cout, LANE)      # lane-dense output stores
    Wo_t = _round_up(Wo, SUBLANE)      # sublane-aligned compute/output width
    Wp = Wo_t + KW - 1                 # padded input width

    in_bytes = jnp.dtype(x_nchw.dtype).itemsize
    pw_dtype = mxu_dtype if mxu_dtype is not None else w_pw.dtype
    pw_bytes = jnp.dtype(pw_dtype).itemsize

    # VMEM footprint of one configuration (explicit buffers only); sized to a
    # budget that fits every generation (v7x has 64 MiB physical VMEM).
    def strip_vmem(bh):
        halo = bh + KH - 1
        return (2 * halo * Wp * Cp * in_bytes            # input halo strips (x2 buffers)
                + 2 * bh * Wo_t * Coutp * in_bytes       # output strips (auto double-buffer)
                + 2 * (KH * KW * Cp * in_bytes + Cp * Coutp * pw_bytes)  # weights
                + bh * Wo_t * Cp * 4)                    # f32 depthwise accumulator

    if block_h is None:
        # Target matmul M = Ho_t * Wo_t ~ 512 so the MXU is well filled and the
        # ~0.35 us per-grid-step overhead is amortized.
        block_h = max(SUBLANE, -(-512 // Wo_t))
    Ho_t = max(1, min(block_h, Ho))
    while Ho_t > 1 and strip_vmem(Ho_t) > vmem_budget:
        Ho_t = max(1, Ho_t // 2)
    Ho_pad = _round_up(Ho, Ho_t)
    R = Ho_pad // Ho_t
    Hp = Ho_pad + KH - 1
    halo_h = Ho_t + KH - 1

    # Glue (plain JAX): layout conversion, spatial zero padding (plus extra
    # bottom rows / right cols so Ho_t | Ho_pad and 8 | Wo_t), channel padding.
    x_nhwc = jnp.transpose(x_nchw, (0, 2, 3, 1))                       # (N,H,W,C)
    x_p = jnp.pad(
        x_nhwc,
        ((0, 0),
         (padding, padding + (Ho_pad - Ho)),
         (padding, padding + (Wo_t - Wo)),
         (0, Cp - C)))                                                 # (N,Hp,Wp,Cp)

    wdw = jnp.transpose(w_dw[:, 0, :, :], (1, 2, 0))                   # (KH,KW,C)
    wdw = jnp.pad(wdw, ((0, 0), (0, 0), (0, Cp - C))).astype(x_nchw.dtype)
    wpw = jnp.transpose(w_pw[:, :, 0, 0], (1, 0))                      # (C,Cout)
    wpw = jnp.pad(wpw, ((0, Cp - C), (0, Coutp - Cout))).astype(pw_dtype)

    kernel = functools.partial(_sepconv_kernel, KH=KH, KW=KW, Ho_t=Ho_t,
                               Wo_t=Wo_t, Cp=Cp, Coutp=Coutp, R=R)

    out_nhwc = pl.pallas_call(
        kernel,
        out_shape=jax.ShapeDtypeStruct((N, Ho_pad, Wo_t, Coutp), x_nchw.dtype),
        grid_spec=pltpu.PrefetchScalarGridSpec(
            num_scalar_prefetch=0,
            grid=(N, R),
            in_specs=[
                # Input stays in HBM; the kernel DMAs halo row strips itself.
                pl.BlockSpec(memory_space=pl.ANY),
                # Weights: constant index maps -> fetched once, VMEM-resident.
                pl.BlockSpec((KH, KW, Cp), lambda n, r: (0, 0, 0)),
                pl.BlockSpec((Cp, Coutp), lambda n, r: (0, 0)),
            ],
            out_specs=pl.BlockSpec((1, Ho_t, Wo_t, Coutp),
                                   lambda n, r: (n, r, 0, 0)),
            scratch_shapes=[
                pltpu.VMEM((2, halo_h, Wp, Cp), x_nchw.dtype),
                pltpu.SemaphoreType.DMA((2,)),
            ],
        ),
        compiler_params=pltpu.CompilerParams(
            # Batch axis parallel (v7x 2-TC split over batches); row axis
            # arbitrary so the manual prefetch chain sees rows in order.
            dimension_semantics=("parallel", "arbitrary"),
            vmem_limit_bytes=48 * 1024 * 1024),
    )(x_p, wdw, wpw)

    # Drop row / col / channel padding, back to NCHW (PyTorch convention).
    out_nhwc = out_nhwc[:, :Ho, :Wo, :Cout]
    return jnp.transpose(out_nhwc, (0, 3, 1, 2))


def _reference(x_nchw, w_dw, w_pw, *, padding):
    """Pure-JAX reference (lax conv) for correctness checking."""
    C = x_nchw.shape[1]
    dn = jax.lax.conv_dimension_numbers(x_nchw.shape, w_dw.shape,
                                        ("NCHW", "OIHW", "NCHW"))
    y = jax.lax.conv_general_dilated(
        x_nchw, w_dw, window_strides=(1, 1),
        padding=((padding, padding), (padding, padding)),
        dimension_numbers=dn, feature_group_count=C)
    dn2 = jax.lax.conv_dimension_numbers(y.shape, w_pw.shape,
                                         ("NCHW", "OIHW", "NCHW"))
    return jax.lax.conv_general_dilated(
        y, w_pw, window_strides=(1, 1), padding=((0, 0), (0, 0)),
        dimension_numbers=dn2, feature_group_count=1)


if __name__ == "__main__":
    key = jax.random.PRNGKey(0)
    k_x, k_dw, k_pw = jax.random.split(key, 3)

    # Small shapes: batch=2, in_channels=4, out_channels=8, spatial=16,
    # kernel_size=3, stride=1, padding=1, bias=False (as in Xception blocks).
    N, Cin, Cout, H, W, K, pad = 2, 4, 8, 16, 16, 3, 1

    x = jax.random.normal(k_x, (N, Cin, H, W), dtype=jnp.float32)
    w_dw = jax.random.normal(k_dw, (Cin, 1, K, K), dtype=jnp.float32) * 0.1     # depthwise
    w_pw = jax.random.normal(k_pw, (Cout, Cin, 1, 1), dtype=jnp.float32) * 0.1  # pointwise

    ref = jax.block_until_ready(_reference(x, w_dw, w_pw, padding=pad))

    # Full-precision path (mxu_dtype=None): tight tolerance vs. f32 reference.
    out_f32 = jax.block_until_ready(
        separable_conv2d(x, w_dw, w_pw, padding=pad, mxu_dtype=None))
    assert out_f32.shape == (N, Cout, H, W), out_f32.shape
    assert jnp.allclose(out_f32, ref, atol=1e-4, rtol=1e-4), "f32 mismatch vs reference"

    # Default fast path: bf16 MXU operands, f32 accumulate (looser tolerance).
    out = jax.block_until_ready(separable_conv2d(x, w_dw, w_pw, padding=pad))
    assert out.shape == (N, Cout, H, W), out.shape
    assert jnp.allclose(out, ref, atol=2e-2, rtol=2e-2), "bf16 mismatch vs reference"

    print("KERNEL_OK")
</pallas_src>

<mosaic_0001>
module attributes {stable_mosaic.version = 11 : i64} {
  func.func @_sepconv_kernel(%arg0: i32, %arg1: i32, %arg2: memref<2x18x18x128xf32, #tpu.memory_space<any>>, %arg3: memref<3x3x128xf32, #tpu.memory_space<vmem>>, %arg4: memref<128x128xf32, #tpu.memory_space<vmem>>, %arg5: memref<1x16x16x128xf32, #tpu.memory_space<vmem>>, %arg6: memref<2x18x18x128xf32, #tpu.memory_space<vmem>>, %arg7: memref<2x!tpu.dma_semaphore, #tpu.memory_space<semaphore_mem>>) attributes {dimension_semantics = [#tpu.dimension_semantics<parallel>, #tpu.dimension_semantics<arbitrary>], iteration_bounds = array<i64: 2, 1>, scalar_prefetch = 0 : i64, scratch_operands = 2 : i64, tpu.core_type = #tpu.core_type<tc>, window_params = [{}, {pipeline_mode = #tpu.pipeline_mode<synchronous>, transform_indices = @transform_1, window_bounds = array<i64: 3, 3, 128>}, {pipeline_mode = #tpu.pipeline_mode<synchronous>, transform_indices = @transform_2, window_bounds = array<i64: 128, 128>}, {transform_indices = @transform_3, window_bounds = array<i64: 1, 16, 16, 128>}]} {
    %c2_i32 = arith.constant 2 : i32
    %c0_i32 = arith.constant 0 : i32
    %0 = arith.cmpi eq, %c2_i32, %c0_i32 : i32
    %c1_i32 = arith.constant 1 : i32
    %1 = arith.select %0, %c1_i32, %c2_i32 : i32
    %2 = arith.remsi %arg1, %1 : i32
    %c0_i32_0 = arith.constant 0 : i32
    %3 = arith.cmpi ne, %2, %c0_i32_0 : i32
    %c0_i32_1 = arith.constant 0 : i32
    %4 = arith.cmpi slt, %2, %c0_i32_1 : i32
    %c0_i32_2 = arith.constant 0 : i32
    %5 = arith.cmpi slt, %1, %c0_i32_2 : i32
    %6 = arith.xori %4, %5 : i1
    %7 = arith.andi %6, %3 : i1
    %8 = arith.addi %2, %1 : i32
    %9 = arith.select %7, %8, %2 : i32
    %c0_i32_3 = arith.constant 0 : i32
    %10 = arith.cmpi eq, %arg1, %c0_i32_3 : i32
    %11 = arith.extui %10 : i1 to i32
    %c0_i32_4 = arith.constant 0 : i32
    %12 = arith.cmpi ne, %11, %c0_i32_4 : i32
    scf.if %12 {
      %c0_i32_67 = arith.constant 0 : i32
      %c0_i32_68 = arith.constant 0 : i32
      %c0_i32_69 = arith.constant 0 : i32
      %c0_i32_70 = arith.constant 0 : i32
      %c0_i32_71 = arith.constant 0 : i32
      %96 = tpu.memref_slice %arg2[%arg0, %c0_i32_69, %c0_i32_70, %c0_i32_71] : memref<2x18x18x128xf32, #tpu.memory_space<any>> -> memref<1x18x18x128xf32, #tpu.memory_space<any>>
      %97 = tpu.memref_squeeze %96 : memref<1x18x18x128xf32, #tpu.memory_space<any>> -> memref<18x18x128xf32, #tpu.memory_space<any>>
      %c0_i32_72 = arith.constant 0 : i32
      %c0_i32_73 = arith.constant 0 : i32
      %c0_i32_74 = arith.constant 0 : i32
      %98 = tpu.memref_slice %arg6[%c0_i32_67, %c0_i32_72, %c0_i32_73, %c0_i32_74] : memref<2x18x18x128xf32, #tpu.memory_space<vmem>> -> memref<1x18x18x128xf32, #tpu.memory_space<vmem>>
      %99 = tpu.memref_squeeze %98 : memref<1x18x18x128xf32, #tpu.memory_space<vmem>> -> memref<18x18x128xf32, #tpu.memory_space<vmem>>
      %100 = tpu.memref_slice %arg7[%c0_i32_68] : memref<2x!tpu.dma_semaphore, #tpu.memory_space<semaphore_mem>> -> memref<1x!tpu.dma_semaphore, #tpu.memory_space<semaphore_mem>>
      %101 = tpu.memref_squeeze %100 : memref<1x!tpu.dma_semaphore, #tpu.memory_space<semaphore_mem>> -> memref<!tpu.dma_semaphore, #tpu.memory_space<semaphore_mem>>
      tpu.enqueue_dma source(%97 : memref<18x18x128xf32, #tpu.memory_space<any>>) target(%99 : memref<18x18x128xf32, #tpu.memory_space<vmem>>) target_semaphore(%101 : memref<!tpu.dma_semaphore, #tpu.memory_space<semaphore_mem>>)
    } else {
    }
    %c16_i32 = arith.constant 16 : i32
    %13 = arith.muli %arg1, %c16_i32 : i32
    %c0_i32_5 = arith.constant 0 : i32
    %c0_i32_6 = arith.constant 0 : i32
    %14 = tpu.memref_slice %arg2[%arg0, %13, %c0_i32_5, %c0_i32_6] : memref<2x18x18x128xf32, #tpu.memory_space<any>> -> memref<1x18x18x128xf32, #tpu.memory_space<any>>
    %15 = tpu.memref_squeeze %14 : memref<1x18x18x128xf32, #tpu.memory_space<any>> -> memref<18x18x128xf32, #tpu.memory_space<any>>
    %c0_i32_7 = arith.constant 0 : i32
    %c0_i32_8 = arith.constant 0 : i32
    %c0_i32_9 = arith.constant 0 : i32
    %16 = tpu.memref_slice %arg6[%9, %c0_i32_7, %c0_i32_8, %c0_i32_9] : memref<2x18x18x128xf32, #tpu.memory_space<vmem>> -> memref<1x18x18x128xf32, #tpu.memory_space<vmem>>
    %17 = tpu.memref_squeeze %16 : memref<1x18x18x128xf32, #tpu.memory_space<vmem>> -> memref<18x18x128xf32, #tpu.memory_space<vmem>>
    %18 = tpu.memref_slice %arg7[%9] : memref<2x!tpu.dma_semaphore, #tpu.memory_space<semaphore_mem>> -> memref<1x!tpu.dma_semaphore, #tpu.memory_space<semaphore_mem>>
    %19 = tpu.memref_squeeze %18 : memref<1x!tpu.dma_semaphore, #tpu.memory_space<semaphore_mem>> -> memref<!tpu.dma_semaphore, #tpu.memory_space<semaphore_mem>>
    tpu.wait_dma2 semaphore(%19 : memref<!tpu.dma_semaphore, #tpu.memory_space<semaphore_mem>>) src(%15 : memref<18x18x128xf32, #tpu.memory_space<any>>) dst(%17 : memref<18x18x128xf32, #tpu.memory_space<vmem>>)
    %20 = arith.index_cast %9 : i32 to index
    %c0 = arith.constant 0 : index
    %c0_10 = arith.constant 0 : index
    %c0_11 = arith.constant 0 : index
    %21 = vector.load %arg6[%20, %c0, %c0_10, %c0_11] : memref<2x18x18x128xf32, #tpu.memory_space<vmem>>, vector<1x16x16x128xf32>
    %c0_12 = arith.constant 0 : index
    %c0_13 = arith.constant 0 : index
    %c0_14 = arith.constant 0 : index
    %22 = vector.load %arg3[%c0_12, %c0_13, %c0_14] : memref<3x3x128xf32, #tpu.memory_space<vmem>>, vector<1x1x128xf32>
    %23 = vector.shape_cast %22 : vector<1x1x128xf32> to vector<128xf32>
    %24 = vector.shape_cast %23 : vector<128xf32> to vector<1x1x1x128xf32>
    %25 = vector.broadcast %24 : vector<1x1x1x128xf32> to vector<1x16x16x128xf32>
    %26 = arith.mulf %21, %25 : vector<1x16x16x128xf32>
    %27 = arith.index_cast %9 : i32 to index
    %c0_15 = arith.constant 0 : index
    %c1 = arith.constant 1 : index
    %c0_16 = arith.constant 0 : index
    %28 = vector.load %arg6[%27, %c0_15, %c1, %c0_16] : memref<2x18x18x128xf32, #tpu.memory_space<vmem>>, vector<1x16x16x128xf32>
    %c0_17 = arith.constant 0 : index
    %c1_18 = arith.constant 1 : index
    %c0_19 = arith.constant 0 : index
    %29 = vector.load %arg3[%c0_17, %c1_18, %c0_19] : memref<3x3x128xf32, #tpu.memory_space<vmem>>, vector<1x1x128xf32>
    %30 = vector.shape_cast %29 : vector<1x1x128xf32> to vector<128xf32>
    %31 = vector.shape_cast %30 : vector<128xf32> to vector<1x1x1x128xf32>
    %32 = vector.broadcast %31 : vector<1x1x1x128xf32> to vector<1x16x16x128xf32>
    %33 = arith.mulf %28, %32 : vector<1x16x16x128xf32>
    %34 = arith.addf %26, %33 : vector<1x16x16x128xf32>
    %35 = arith.index_cast %9 : i32 to index
    %c0_20 = arith.constant 0 : index
    %c2 = arith.constant 2 : index
    %c0_21 = arith.constant 0 : index
    %36 = vector.load %arg6[%35, %c0_20, %c2, %c0_21] : memref<2x18x18x128xf32, #tpu.memory_space<vmem>>, vector<1x16x16x128xf32>
    %c0_22 = arith.constant 0 : index
    %c2_23 = arith.constant 2 : index
    %c0_24 = arith.constant 0 : index
    %37 = vector.load %arg3[%c0_22, %c2_23, %c0_24] : memref<3x3x128xf32, #tpu.memory_space<vmem>>, vector<1x1x128xf32>
    %38 = vector.shape_cast %37 : vector<1x1x128xf32> to vector<128xf32>
    %39 = vector.shape_cast %38 : vector<128xf32> to vector<1x1x1x128xf32>
    %40 = vector.broadcast %39 : vector<1x1x1x128xf32> to vector<1x16x16x128xf32>
    %41 = arith.mulf %36, %40 : vector<1x16x16x128xf32>
    %42 = arith.addf %34, %41 : vector<1x16x16x128xf32>
    %43 = arith.index_cast %9 : i32 to index
    %c1_25 = arith.constant 1 : index
    %c0_26 = arith.constant 0 : index
    %c0_27 = arith.constant 0 : index
    %44 = vector.load %arg6[%43, %c1_25, %c0_26, %c0_27] : memref<2x18x18x128xf32, #tpu.memory_space<vmem>>, vector<1x16x16x128xf32>
    %c1_28 = arith.constant 1 : index
    %c0_29 = arith.constant 0 : index
    %c0_30 = arith.constant 0 : index
    %45 = vector.load %arg3[%c1_28, %c0_29, %c0_30] : memref<3x3x128xf32, #tpu.memory_space<vmem>>, vector<1x1x128xf32>
    %46 = vector.shape_cast %45 : vector<1x1x128xf32> to vector<128xf32>
    %47 = vector.shape_cast %46 : vector<128xf32> to vector<1x1x1x128xf32>
    %48 = vector.broadcast %47 : vector<1x1x1x128xf32> to vector<1x16x16x128xf32>
    %49 = arith.mulf %44, %48 : vector<1x16x16x128xf32>
    %50 = arith.addf %42, %49 : vector<1x16x16x128xf32>
    %51 = arith.index_cast %9 : i32 to index
    %c1_31 = arith.constant 1 : index
    %c1_32 = arith.constant 1 : index
    %c0_33 = arith.constant 0 : index
    %52 = vector.load %arg6[%51, %c1_31, %c1_32, %c0_33] : memref<2x18x18x128xf32, #tpu.memory_space<vmem>>, vector<1x16x16x128xf32>
    %c1_34 = arith.constant 1 : index
    %c1_35 = arith.constant 1 : index
    %c0_36 = arith.constant 0 : index
    %53 = vector.load %arg3[%c1_34, %c1_35, %c0_36] : memref<3x3x128xf32, #tpu.memory_space<vmem>>, vector<1x1x128xf32>
    %54 = vector.shape_cast %53 : vector<1x1x128xf32> to vector<128xf32>
    %55 = vector.shape_cast %54 : vector<128xf32> to vector<1x1x1x128xf32>
    %56 = vector.broadcast %55 : vector<1x1x1x128xf32> to vector<1x16x16x128xf32>
    %57 = arith.mulf %52, %56 : vector<1x16x16x128xf32>
    %58 = arith.addf %50, %57 : vector<1x16x16x128xf32>
    %59 = arith.index_cast %9 : i32 to index
    %c1_37 = arith.constant 1 : index
    %c2_38 = arith.constant 2 : index
    %c0_39 = arith.constant 0 : index
    %60 = vector.load %arg6[%59, %c1_37, %c2_38, %c0_39] : memref<2x18x18x128xf32, #tpu.memory_space<vmem>>, vector<1x16x16x128xf32>
    %c1_40 = arith.constant 1 : index
    %c2_41 = arith.constant 2 : index
    %c0_42 = arith.constant 0 : index
    %61 = vector.load %arg3[%c1_40, %c2_41, %c0_42] : memref<3x3x128xf32, #tpu.memory_space<vmem>>, vector<1x1x128xf32>
    %62 = vector.shape_cast %61 : vector<1x1x128xf32> to vector<128xf32>
    %63 = vector.shape_cast %62 : vector<128xf32> to vector<1x1x1x128xf32>
    %64 = vector.broadcast %63 : vector<1x1x1x128xf32> to vector<1x16x16x128xf32>
    %65 = arith.mulf %60, %64 : vector<1x16x16x128xf32>
    %66 = arith.addf %58, %65 : vector<1x16x16x128xf32>
    %67 = arith.index_cast %9 : i32 to index
    %c2_43 = arith.constant 2 : index
    %c0_44 = arith.constant 0 : index
    %c0_45 = arith.constant 0 : index
    %68 = vector.load %arg6[%67, %c2_43, %c0_44, %c0_45] : memref<2x18x18x128xf32, #tpu.memory_space<vmem>>, vector<1x16x16x128xf32>
    %c2_46 = arith.constant 2 : index
    %c0_47 = arith.constant 0 : index
    %c0_48 = arith.constant 0 : index
    %69 = vector.load %arg3[%c2_46, %c0_47, %c0_48] : memref<3x3x128xf32, #tpu.memory_space<vmem>>, vector<1x1x128xf32>
    %70 = vector.shape_cast %69 : vector<1x1x128xf32> to vector<128xf32>
    %71 = vector.shape_cast %70 : vector<128xf32> to vector<1x1x1x128xf32>
    %72 = vector.broadcast %71 : vector<1x1x1x128xf32> to vector<1x16x16x128xf32>
    %73 = arith.mulf %68, %72 : vector<1x16x16x128xf32>
    %74 = arith.addf %66, %73 : vector<1x16x16x128xf32>
    %75 = arith.index_cast %9 : i32 to index
    %c2_49 = arith.constant 2 : index
    %c1_50 = arith.constant 1 : index
    %c0_51 = arith.constant 0 : index
    %76 = vector.load %arg6[%75, %c2_49, %c1_50, %c0_51] : memref<2x18x18x128xf32, #tpu.memory_space<vmem>>, vector<1x16x16x128xf32>
    %c2_52 = arith.constant 2 : index
    %c1_53 = arith.constant 1 : index
    %c0_54 = arith.constant 0 : index
    %77 = vector.load %arg3[%c2_52, %c1_53, %c0_54] : memref<3x3x128xf32, #tpu.memory_space<vmem>>, vector<1x1x128xf32>
    %78 = vector.shape_cast %77 : vector<1x1x128xf32> to vector<128xf32>
    %79 = vector.shape_cast %78 : vector<128xf32> to vector<1x1x1x128xf32>
    %80 = vector.broadcast %79 : vector<1x1x1x128xf32> to vector<1x16x16x128xf32>
    %81 = arith.mulf %76, %80 : vector<1x16x16x128xf32>
    %82 = arith.addf %74, %81 : vector<1x16x16x128xf32>
    %83 = arith.index_cast %9 : i32 to index
    %c2_55 = arith.constant 2 : index
    %c2_56 = arith.constant 2 : index
    %c0_57 = arith.constant 0 : index
    %84 = vector.load %arg6[%83, %c2_55, %c2_56, %c0_57] : memref<2x18x18x128xf32, #tpu.memory_space<vmem>>, vector<1x16x16x128xf32>
    %c2_58 = arith.constant 2 : index
    %c2_59 = arith.constant 2 : index
    %c0_60 = arith.constant 0 : index
    %85 = vector.load %arg3[%c2_58, %c2_59, %c0_60] : memref<3x3x128xf32, #tpu.memory_space<vmem>>, vector<1x1x128xf32>
    %86 = vector.shape_cast %85 : vector<1x1x128xf32> to vector<128xf32>
    %87 = vector.shape_cast %86 : vector<128xf32> to vector<1x1x1x128xf32>
    %88 = vector.broadcast %87 : vector<1x1x1x128xf32> to vector<1x16x16x128xf32>
    %89 = arith.mulf %84, %88 : vector<1x16x16x128xf32>
    %90 = arith.addf %82, %89 : vector<1x16x16x128xf32>
    %91 = vector.shape_cast %90 : vector<1x16x16x128xf32> to vector<256x128xf32>
    %c0_61 = arith.constant 0 : index
    %c0_62 = arith.constant 0 : index
    %92 = vector.load %arg4[%c0_61, %c0_62] : memref<128x128xf32, #tpu.memory_space<vmem>>, vector<128x128xf32>
    %cst = arith.constant dense<0.000000e+00> : vector<256x128xf32>
    %93 = tpu.matmul %91, %92, %cst {dimension_numbers = #tpu.dot_dimension_numbers<[1], [0], [0], [1], [0, 0, 1, 1], [], []>} : vector<256x128xf32>, vector<128x128xf32>, vector<256x128xf32> -> vector<256x128xf32>
    %94 = vector.shape_cast %93 : vector<256x128xf32> to vector<1x16x16x128xf32>
    %c0_63 = arith.constant 0 : index
    %c0_64 = arith.constant 0 : index
    %c0_65 = arith.constant 0 : index
    %c0_66 = arith.constant 0 : index
    %95 = vector.load %arg5[%c0_63, %c0_64, %c0_65, %c0_66] : memref<1x16x16x128xf32, #tpu.memory_space<vmem>>, vector<1x16x16x128xf32>
    tpu.vector_store %arg5[%c0_63, %c0_64, %c0_65, %c0_66], %94 {strides = array<i32>} : memref<1x16x16x128xf32, #tpu.memory_space<vmem>>, vector<1x16x16x128xf32>,
    return
  }
  func.func @transform_1(%arg0: i32, %arg1: i32) -> (i32, i32, i32) {
    %c0_i32 = arith.constant 0 : i32
    %c0_i32_0 = arith.constant 0 : i32
    %c0_i32_1 = arith.constant 0 : i32
    %c0_i32_2 = arith.constant 0 : i32
    return %c0_i32, %c0_i32_0, %c0_i32_1 : i32, i32, i32
  }
  func.func @transform_2(%arg0: i32, %arg1: i32) -> (i32, i32) {
    %c0_i32 = arith.constant 0 : i32
    %c0_i32_0 = arith.constant 0 : i32
    %c0_i32_1 = arith.constant 0 : i32
    return %c0_i32, %c0_i32_0 : i32, i32
  }
  func.func @transform_3(%arg0: i32, %arg1: i32) -> (i32, i32, i32, i32) {
    %c0_i32 = arith.constant 0 : i32
    %c0_i32_0 = arith.constant 0 : i32
    %c0_i32_1 = arith.constant 0 : i32
    return %arg0, %arg1, %c0_i32, %c0_i32_0 : i32, i32, i32, i32
  }
}

</mosaic_0001>

<llo_original>
// kernel: tpu_custom_call.1
$region0: #{tpu_custom_call.1}
  #allocation0 [shape = 'u32[]', space=smem, size = 0x4, offset = 0x4, fixed_abs, tag = 'smem constant byte address 0x4 - core index']
  #allocation1 [shape = 'u32[144,128]{1,0:T(1,128)}', space=vmem, size = 0x12000, scoped, tag = 'internal scratch']
  #allocation2 [shape = 'f32[2,18,18,128]{3,2,1,0:T(8,128)}', space=vmem, size = 0x6c000, scoped, tag = 'scratch operand']
  #allocation3 [shape = 's32[2]{0}', space=sflag, size = 0x8, scoped, tag = 'scratch operand']
  #allocation6 [shape = 's32[]', space=sflag, size = 0x4, offset = 0, fixed_abs, tag = 'sflag constant byte address 0x0 - dummy sync flag']
  %s0 = inlined_call_operand.vmem [shape: f32[2,18,18,128], index: 0, kind: input, shape index: {}]
  %s1 = inlined_call_operand.vmem [shape: f32[3,3,128], index: 1, kind: input, shape index: {}]
  %s2 = inlined_call_operand.vmem [shape: f32[128,128], index: 2, kind: input, shape index: {}]
  %s3 = inlined_call_operand.hbm [shape: f32[2,16,16,128], index: 3, kind: output, shape index: {}]
  %s4 = sld [smem:[#allocation0]]
  $region82: #{tpu_custom_call.1} parent=0
    _
  %s6 = ssub.s32 1, %s4
  %s7 = scalar_select 0, %s6, %s4
  $region1: #{tpu_custom_call.1} parent=0
    #allocation4 [shape = 'u8[262144]{0}', space=vmem, size = 0x40000, scoped, tag = 'output window, operand 0']
    #allocation5 [shape = 's32[2]{0}', space=sflag, size = 0x8, scoped, tag = 'scoped memory for tpu_custom_call.1']
    %8 = vsyncpa [#allocation5], 0
    %s9 = scalar_lea.sflag [#allocation5], 1
    %10 = vsyncpa %s9, 0
    loop: start=0, step=1, limit=4
    $region2: #{tpu_custom_call.1} parent=1 // loop_pre_header
      _
    $region3: #{tpu_custom_call.1} parent=1 // loop_header
      %s12 = sphi 0, %s16
      %p13 = scmp.ge.s32.totalorder %s12, 4
      %s19 = sphi 0, %s31
      %s20 = sphi 0, %s27
      %s21 = sphi 0, %s19
      %s22 = sphi 0, %s20
      %s23 = sphi 0, %s21
      %s24 = sphi 0, %s22
      %s32 = sphi 0, %s32
      %s34 = sphi 0, %s32
      %s35 = sphi 0, %s34
      %s49 = sphi 0, %s35
      %s53 = sphi 0, %s53
      %s55 = sphi 0, %s53
      %s56 = sphi 0, %s55
      %s70 = sphi 0, %s56
      %s78 = sphi 0, %s80
      %s81 = sphi 0, %s78
      %s82 = sphi 0, %s81
      %s98 = sphi 0, %s82
    $region4: #{tpu_custom_call.1} parent=1 // loop_header_branch
      %15 = sbr.rel (%p13) target = $region8
    $region5: #{tpu_custom_call.1} parent=1 // loop_body
      %s17 = ssub.s32 %s12, 1
      %s18 = ssub.s32 %s12, 2
      %s25 = sadd.s32 1, %s20
      %p26 = scmp.ge.s32.totalorder %s25, 1
      %s27 = scalar_select %p26, 0, %s25
      %s28 = sadd.s32 1, %s19
      %s29 = scalar_select %p26, %s28, %s19
      %p30 = scmp.ge.s32.totalorder %s29, 2
      %s31 = scalar_select %p30, 0, %s29
      %s33 = sadd.s32 %s32, 1
      %p36 = scmp.eq.s32.totalorder %s12, 1
      %p37 = scmp.ne.s32.totalorder %s32, %s34
      %p38 = scmp.eq.s32.totalorder %s12, 0
      %p39 = por %p37, %p38
      %p40 = scmp.ne.s32.totalorder %s32, %s34
      %p41 = scmp.eq.s32.totalorder %s17, 1
      %p42 = por %p40, %p41
      %p43 = scmp.ne.s32.totalorder %s34, %s35
      %p44 = scmp.eq.s32.totalorder %s17, 0
      %p45 = por %p43, %p44
      %p46 = scmp.ne.s32.totalorder %s34, %s35
      %p47 = scmp.eq.s32.totalorder %s18, 1
      %p48 = por %p46, %p47
      %p50 = scmp.ne.s32.totalorder %s35, %s49
      %p51 = scmp.eq.s32.totalorder %s18, 0
      %p52 = por %p50, %p51
      %s54 = sadd.s32 %s53, 1
      %p57 = scmp.eq.s32.totalorder %s12, 1
      %p58 = scmp.ne.s32.totalorder %s53, %s55
      %p59 = scmp.eq.s32.totalorder %s12, 0
      %p60 = por %p58, %p59
      %p61 = scmp.ne.s32.totalorder %s53, %s55
      %p62 = scmp.eq.s32.totalorder %s17, 1
      %p63 = por %p61, %p62
      %p64 = scmp.ne.s32.totalorder %s55, %s56
      %p65 = scmp.eq.s32.totalorder %s17, 0
      %p66 = por %p64, %p65
      %p67 = scmp.ne.s32.totalorder %s55, %s56
      %p68 = scmp.eq.s32.totalorder %s18, 1
      %p69 = por %p67, %p68
      %p71 = scmp.ne.s32.totalorder %s56, %s70
      %p72 = scmp.eq.s32.totalorder %s18, 0
      %p73 = por %p71, %p72
      %s74 = ssub.s32 %s19, %s31
      %s75 = ssub.s32 %s20, %s27
      %s76 = sor.u32 %s74, %s75
      %p77 = scmp.eq.s32.totalorder %s76, 0
      %s79 = sadd.s32 %s78, 1
      %s80 = scalar_select %p77, %s78, %s79
      %p83 = pneg %p77
      %p84 = scmp.eq.s32.totalorder %s12, 1
      %p85 = por %p83, %p84
      %p86 = scmp.ne.s32.totalorder %s78, %s81
      %p87 = scmp.eq.s32.totalorder %s12, 0
      %p88 = por %p86, %p87
      %p89 = scmp.ne.s32.totalorder %s78, %s81
      %p90 = scmp.eq.s32.totalorder %s17, 1
      %p91 = por %p89, %p90
      %p92 = scmp.ne.s32.totalorder %s81, %s82
      %p93 = scmp.eq.s32.totalorder %s17, 0
      %p94 = por %p92, %p93
      %p95 = scmp.ne.s32.totalorder %s81, %s82
      %p96 = scmp.eq.s32.totalorder %s18, 1
      %p97 = por %p95, %p96
      %p99 = scmp.ne.s32.totalorder %s82, %s98
      %p100 = scmp.eq.s32.totalorder %s18, 0
      %p101 = por %p99, %p100
      %p102 = scmp.le.s32.totalorder 1, %s12
      %p103 = scmp.lt.s32.totalorder %s12, 3
      %p104 = pnand %p102, %p103
      %p105 = pneg %p104
      // Predicated region
      $region9: #{tpu_custom_call.1} parent=5 // pred_check
        _
      $region10: #{tpu_custom_call.1} parent=5 // pred_check_branch
        %107 = sbr.rel (%p104) target = $region12
      $region11: #{tpu_custom_call.1} parent=5 // pred_region
        %s108 = ssub.s32 %s12, 1
        // Predicated region
        $region13: #{tpu_custom_call.1} parent=11 // pred_check
          %p109 = pneg %p45
        $region14: #{tpu_custom_call.1} parent=11 // pred_check_branch
          %111 = sbr.rel (%p109) target = $region16
        $region15: #{tpu_custom_call.1} parent=11 // pred_region
          _
        $region16: #{tpu_custom_call.1} parent=11 // pred_fallthru
          _
        // Predicated region
        $region17: #{tpu_custom_call.1} parent=11 // pred_check
          %p112 = pneg %p66
        $region18: #{tpu_custom_call.1} parent=11 // pred_check_branch
          %114 = sbr.rel (%p112) target = $region20
        $region19: #{tpu_custom_call.1} parent=11 // pred_region
          _
        $region20: #{tpu_custom_call.1} parent=11 // pred_fallthru
          _
      $region12: #{tpu_custom_call.1} parent=5 // pred_fallthru
        _
      %p115 = scmp.lt.s32.totalorder %s12, 2
      // Predicated region
      $region21: #{tpu_custom_call.1} parent=5 // pred_check
        %p116 = pneg %p115
      $region22: #{tpu_custom_call.1} parent=5 // pred_check_branch
        %118 = sbr.rel (%p116) target = $region24
      $region23: #{tpu_custom_call.1} parent=5 // pred_region
        _
      $region24: #{tpu_custom_call.1} parent=5 // pred_fallthru
        _
      %p119 = scmp.le.s32.totalorder 1, %s12
      %p120 = scmp.lt.s32.totalorder %s12, 3
      %p121 = pnand %p119, %p120
      %p122 = pneg %p121
      // Predicated region
      $region25: #{tpu_custom_call.1} parent=5 // pred_check
        _
      $region26: #{tpu_custom_call.1} parent=5 // pred_check_branch
        %124 = sbr.rel (%p121) target = $region28
      $region27: #{tpu_custom_call.1} parent=5 // pred_region
        %s125 = ssub.s32 %s12, 1
        %p126 = pneg %p45
        %p127 = pneg %p42
        %p128 = pneg %p66
        %p129 = pneg %p63
        %p130 = pneg %p94
        %p131 = pneg %p91
        %s132 = sand.u32 %s81, 1
        %s133 = scalar_lea.sflag [#allocation5], %s132
        %s134 = sand.u32 %s81, 1
        %s135 = smul.addr %s134, 256
        %s136 = scalar_lea.vmem [#allocation4], %s135
        %s137 = smul.u32 16, %s22
        %p138 = scmp.lt.s32.totalorder %s22, 0
        %s139 = ssub.s32 0, %s22
        %s140 = scalar_select %p138, %s139, %s22
        %s141 = sand.u32 %s140, 1
        %s142 = ssub.s32 0, %s141
        %s143 = scalar_select %p138, %s142, %s141
        %p144 = scmp.ne.s32.totalorder %s143, 0
        %p145 = scmp.lt.s32.totalorder %s143, 0
        %p146 = pnand %p145, %p144
        %p147 = pneg %p146
        %s148 = sadd.s32 %s143, 2
        %s149 = scalar_select %p147, %s148, %s143
        %p150 = scmp.eq.s32.totalorder %s22, 0
        // Predicated region
        $region29: #{tpu_custom_call.1} parent=27 // pred_check
          %p151 = pneg %p150
        $region30: #{tpu_custom_call.1} parent=27 // pred_check_branch
          %153 = sbr.rel (%p151) target = $region32
        $region31: #{tpu_custom_call.1} parent=27 // pred_region
          %s154 = smul.u32 %s21, 432
          %s155 = scalar_lea.vmem %s0, %s154
          %p157 = scmp.lt.u32.totalorder 18, 8
          %p158 = pneg %p157
          // Predicated region
          $region33: #{tpu_custom_call.1} parent=31 // pred_check
            _
          $region34: #{tpu_custom_call.1} parent=31 // pred_check_branch
            %160 = sbr.rel (%p157) target = $region36
          $region35: #{tpu_custom_call.1} parent=31 // pred_region
            %s209 = sand.u32 18, 7
            %p210 = scmp.eq.s32.totalorder %s209, 0
            %p211 = pneg %p210
            // Predicated region
            $region48: #{tpu_custom_call.1} parent=35 // pred_check
              _
            $region49: #{tpu_custom_call.1} parent=35 // pred_check_branch
              %213 = sbr.rel (%p210) target = $region51
            $region50: #{tpu_custom_call.1} parent=35 // pred_region
              %s214 = sand.u32 18, 7
              %s215 = ssub.s32 18, %s214
              %s216 = scalar_lea.vmem %s155, %s215
              %s217 = ssub.s32 18, %s214
              %s218 = scalar_lea.vmem [#allocation2], %s217
              loop: start=0, step=1, limit=1
              $region52: #{tpu_custom_call.1} parent=50 // loop_pre_header
                _
              $region53: #{tpu_custom_call.1} parent=50 // loop_header
                %s220 = sphi 0, %s224
                %p221 = scmp.ge.s32.totalorder %s220, 1
                %s225 = sphi %s155, %s155
                %s226 = sphi [#allocation2], [#allocation2]
              $region54: #{tpu_custom_call.1} parent=50 // loop_header_branch
                %223 = sbr.rel (%p221) target = $region58
              $region55: #{tpu_custom_call.1} parent=50 // loop_body
                %v227 = vld [vmem:[%s225] sm:$0xff]
                %228 = vst [vmem:[%s226] sm:$0xff] %v227
                %v229 = vld [vmem:[%s225 + $0x8] sm:$0xff]
                %230 = vst [vmem:[%s226 + $0x8] sm:$0xff] %v229
                %v231 = vld [vmem:[%s225 + $0x18] sm:$0xff]
                %232 = vst [vmem:[%s226 + $0x18] sm:$0xff] %v231
                %v233 = vld [vmem:[%s225 + $0x20] sm:$0xff]
                %234 = vst [vmem:[%s226 + $0x20] sm:$0xff] %v233
                %v235 = vld [vmem:[%s225 + $0x30] sm:$0xff]
                %236 = vst [vmem:[%s226 + $0x30] sm:$0xff] %v235
                %v237 = vld [vmem:[%s225 + $0x38] sm:$0xff]
                %238 = vst [vmem:[%s226 + $0x38] sm:$0xff] %v237
                %v239 = vld [vmem:[%s225 + $0x48] sm:$0xff]
                %240 = vst [vmem:[%s226 + $0x48] sm:$0xff] %v239
                %v241 = vld [vmem:[%s225 + $0x50] sm:$0xff]
                %242 = vst [vmem:[%s226 + $0x50] sm:$0xff] %v241
                %v243 = vld [vmem:[%s225 + $0x60] sm:$0xff]
                %244 = vst [vmem:[%s226 + $0x60] sm:$0xff] %v243
                %v245 = vld [vmem:[%s225 + $0x68] sm:$0xff]
                %246 = vst [vmem:[%s226 + $0x68] sm:$0xff] %v245
                %v247 = vld [vmem:[%s225 + $0x78] sm:$0xff]
                %248 = vst [vmem:[%s226 + $0x78] sm:$0xff] %v247
                %v249 = vld [vmem:[%s225 + $0x80] sm:$0xff]
                %250 = vst [vmem:[%s226 + $0x80] sm:$0xff] %v249
                %v251 = vld [vmem:[%s225 + $0x90] sm:$0xff]
                %252 = vst [vmem:[%s226 + $0x90] sm:$0xff] %v251
                %v253 = vld [vmem:[%s225 + $0x98] sm:$0xff]
                %254 = vst [vmem:[%s226 + $0x98] sm:$0xff] %v253
                %v255 = vld [vmem:[%s225 + $0xa8] sm:$0xff]
                %256 = vst [vmem:[%s226 + $0xa8] sm:$0xff] %v255
                %v257 = vld [vmem:[%s225 + $0xb0] sm:$0xff]
                %258 = vst [vmem:[%s226 + $0xb0] sm:$0xff] %v257
                %v259 = vld [vmem:[%s225 + $0xc0] sm:$0xff]
                %260 = vst [vmem:[%s226 + $0xc0] sm:$0xff] %v259
                %v261 = vld [vmem:[%s225 + $0xc8] sm:$0xff]
                %262 = vst [vmem:[%s226 + $0xc8] sm:$0xff] %v261
                %v263 = vld [vmem:[%s225 + $0xd8] sm:$0xff]
                %264 = vst [vmem:[%s226 + $0xd8] sm:$0xff] %v263
                %v265 = vld [vmem:[%s225 + $0xe0] sm:$0xff]
                %266 = vst [vmem:[%s226 + $0xe0] sm:$0xff] %v265
                %v267 = vld [vmem:[%s225 + $0xf0] sm:$0xff]
                %268 = vst [vmem:[%s226 + $0xf0] sm:$0xff] %v267
                %v269 = vld [vmem:[%s225 + $0xf8] sm:$0xff]
                %270 = vst [vmem:[%s226 + $0xf8] sm:$0xff] %v269
                %v271 = vld [vmem:[%s225 + $0x108] sm:$0xff]
                %272 = vst [vmem:[%s226 + $0x108] sm:$0xff] %v271
                %v273 = vld [vmem:[%s225 + $0x110] sm:$0xff]
                %274 = vst [vmem:[%s226 + $0x110] sm:$0xff] %v273
                %v275 = vld [vmem:[%s225 + $0x120] sm:$0xff]
                %276 = vst [vmem:[%s226 + $0x120] sm:$0xff] %v275
                %v277 = vld [vmem:[%s225 + $0x128] sm:$0xff]
                %278 = vst [vmem:[%s226 + $0x128] sm:$0xff] %v277
                %v279 = vld [vmem:[%s225 + $0x138] sm:$0xff]
                %280 = vst [vmem:[%s226 + $0x138] sm:$0xff] %v279
                %v281 = vld [vmem:[%s225 + $0x140] sm:$0xff]
                %282 = vst [vmem:[%s226 + $0x140] sm:$0xff] %v281
                %v283 = vld [vmem:[%s225 + $0x150] sm:$0xff]
                %284 = vst [vmem:[%s226 + $0x150] sm:$0xff] %v283
                %v285 = vld [vmem:[%s225 + $0x158] sm:$0xff]
                %286 = vst [vmem:[%s226 + $0x158] sm:$0xff] %v285
                %v287 = vld [vmem:[%s225 + $0x168] sm:$0xff]
                %288 = vst [vmem:[%s226 + $0x168] sm:$0xff] %v287
                %v289 = vld [vmem:[%s225 + $0x170] sm:$0xff]
                %290 = vst [vmem:[%s226 + $0x170] sm:$0xff] %v289
                %v291 = vld [vmem:[%s225 + $0x180] sm:$0xff]
                %292 = vst [vmem:[%s226 + $0x180] sm:$0xff] %v291
                %v293 = vld [vmem:[%s225 + $0x188] sm:$0xff]
                %294 = vst [vmem:[%s226 + $0x188] sm:$0xff] %v293
                %v295 = vld [vmem:[%s225 + $0x198] sm:$0xff]
                %296 = vst [vmem:[%s226 + $0x198] sm:$0xff] %v295
                %v297 = vld [vmem:[%s225 + $0x1a0] sm:$0xff]
                %298 = vst [vmem:[%s226 + $0x1a0] sm:$0xff] %v297
              $region56: #{tpu_custom_call.1} parent=50 // loop_footer
                %s224 = sadd.s32 1, %s220
              $region57: #{tpu_custom_call.1} parent=50 // loop_footer_branch
                %219 = sbr.rel target = $region53
              $region58: #{tpu_custom_call.1} parent=50 // loop_exit
                _
              %s299 = sshllo.u32 0, %s214
              loop: start=0, step=1, limit=1
              $region59: #{tpu_custom_call.1} parent=50 // loop_pre_header
                _
              $region60: #{tpu_custom_call.1} parent=50 // loop_header
                %s301 = sphi 0, %s305
                %p302 = scmp.ge.s32.totalorder %s301, 1
                %s306 = sphi %s216, %s216
                %s307 = sphi %s218, %s218
              $region61: #{tpu_custom_call.1} parent=50 // loop_header_branch
                %304 = sbr.rel (%p302) target = $region65
              $region62: #{tpu_custom_call.1} parent=50 // loop_body
                %v308 = vld [vmem:[%s306] sm:%s299]
                %309 = vst [vmem:[%s307] sm:%s299] %v308
                %v310 = vld [vmem:[%s306 + $0x18] sm:%s299]
                %311 = vst [vmem:[%s307 + $0x18] sm:%s299] %v310
                %v312 = vld [vmem:[%s306 + $0x30] sm:%s299]
                %313 = vst [vmem:[%s307 + $0x30] sm:%s299] %v312
                %v314 = vld [vmem:[%s306 + $0x48] sm:%s299]
                %315 = vst [vmem:[%s307 + $0x48] sm:%s299] %v314
                %v316 = vld [vmem:[%s306 + $0x60] sm:%s299]
                %317 = vst [vmem:[%s307 + $0x60] sm:%s299] %v316
                %v318 = vld [vmem:[%s306 + $0x78] sm:%s299]
                %319 = vst [vmem:[%s307 + $0x78] sm:%s299] %v318
                %v320 = vld [vmem:[%s306 + $0x90] sm:%s299]
                %321 = vst [vmem:[%s307 + $0x90] sm:%s299] %v320
                %v322 = vld [vmem:[%s306 + $0xa8] sm:%s299]
                %323 = vst [vmem:[%s307 + $0xa8] sm:%s299] %v322
                %v324 = vld [vmem:[%s306 + $0xc0] sm:%s299]
                %325 = vst [vmem:[%s307 + $0xc0] sm:%s299] %v324
                %v326 = vld [vmem:[%s306 + $0xd8] sm:%s299]
                %327 = vst [vmem:[%s307 + $0xd8] sm:%s299] %v326
                %v328 = vld [vmem:[%s306 + $0xf0] sm:%s299]
                %329 = vst [vmem:[%s307 + $0xf0] sm:%s299] %v328
                %v330 = vld [vmem:[%s306 + $0x108] sm:%s299]
                %331 = vst [vmem:[%s307 + $0x108] sm:%s299] %v330
                %v332 = vld [vmem:[%s306 + $0x120] sm:%s299]
                %333 = vst [vmem:[%s307 + $0x120] sm:%s299] %v332
                %v334 = vld [vmem:[%s306 + $0x138] sm:%s299]
                %335 = vst [vmem:[%s307 + $0x138] sm:%s299] %v334
                %v336 = vld [vmem:[%s306 + $0x150] sm:%s299]
                %337 = vst [vmem:[%s307 + $0x150] sm:%s299] %v336
                %v338 = vld [vmem:[%s306 + $0x168] sm:%s299]
                %339 = vst [vmem:[%s307 + $0x168] sm:%s299] %v338
                %v340 = vld [vmem:[%s306 + $0x180] sm:%s299]
                %341 = vst [vmem:[%s307 + $0x180] sm:%s299] %v340
                %v342 = vld [vmem:[%s306 + $0x198] sm:%s299]
                %343 = vst [vmem:[%s307 + $0x198] sm:%s299] %v342
              $region63: #{tpu_custom_call.1} parent=50 // loop_footer
                %s305 = sadd.s32 1, %s301
              $region64: #{tpu_custom_call.1} parent=50 // loop_footer_branch
                %300 = sbr.rel target = $region60
              $region65: #{tpu_custom_call.1} parent=50 // loop_exit
                _
            $region51: #{tpu_custom_call.1} parent=35 // pred_fallthru
              _
          $region36: #{tpu_custom_call.1} parent=31 // pred_fallthru
            _
          // Predicated region
          $region37: #{tpu_custom_call.1} parent=31 // pred_check
            %p161 = pneg %p157
          $region38: #{tpu_custom_call.1} parent=31 // pred_check_branch
            %163 = sbr.rel (%p161) target = $region40
          $region39: #{tpu_custom_call.1} parent=31 // pred_region
            %s164 = sshllo.u32 0, 18
            loop: start=0, step=1, limit=1
            $region41: #{tpu_custom_call.1} parent=39 // loop_pre_header
              _
            $region42: #{tpu_custom_call.1} parent=39 // loop_header
              %s166 = sphi 0, %s170
              %p167 = scmp.ge.s32.totalorder %s166, 1
              %s171 = sphi %s155, %s155
              %s172 = sphi [#allocation2], [#allocation2]
            $region43: #{tpu_custom_call.1} parent=39 // loop_header_branch
              %169 = sbr.rel (%p167) target = $region47
            $region44: #{tpu_custom_call.1} parent=39 // loop_body
              %v173 = vld [vmem:[%s171] sm:%s164]
              %174 = vst [vmem:[%s172] sm:%s164] %v173
              %v175 = vld [vmem:[%s171 + $0x18] sm:%s164]
              %176 = vst [vmem:[%s172 + $0x18] sm:%s164] %v175
              %v177 = vld [vmem:[%s171 + $0x30] sm:%s164]
              %178 = vst [vmem:[%s172 + $0x30] sm:%s164] %v177
              %v179 = vld [vmem:[%s171 + $0x48] sm:%s164]
              %180 = vst [vmem:[%s172 + $0x48] sm:%s164] %v179
              %v181 = vld [vmem:[%s171 + $0x60] sm:%s164]
              %182 = vst [vmem:[%s172 + $0x60] sm:%s164] %v181
              %v183 = vld [vmem:[%s171 + $0x78] sm:%s164]
              %184 = vst [vmem:[%s172 + $0x78] sm:%s164] %v183
              %v185 = vld [vmem:[%s171 + $0x90] sm:%s164]
              %186 = vst [vmem:[%s172 + $0x90] sm:%s164] %v185
              %v187 = vld [vmem:[%s171 + $0xa8] sm:%s164]
              %188 = vst [vmem:[%s172 + $0xa8] sm:%s164] %v187
              %v189 = vld [vmem:[%s171 + $0xc0] sm:%s164]
              %190 = vst [vmem:[%s172 + $0xc0] sm:%s164] %v189
              %v191 = vld [vmem:[%s171 + $0xd8] sm:%s164]
              %192 = vst [vmem:[%s172 + $0xd8] sm:%s164] %v191
              %v193 = vld [vmem:[%s171 + $0xf0] sm:%s164]
              %194 = vst [vmem:[%s172 + $0xf0] sm:%s164] %v193
              %v195 = vld [vmem:[%s171 + $0x108] sm:%s164]
              %196 = vst [vmem:[%s172 + $0x108] sm:%s164] %v195
              %v197 = vld [vmem:[%s171 + $0x120] sm:%s164]
              %198 = vst [vmem:[%s172 + $0x120] sm:%s164] %v197
              %v199 = vld [vmem:[%s171 + $0x138] sm:%s164]
              %200 = vst [vmem:[%s172 + $0x138] sm:%s164] %v199
              %v201 = vld [vmem:[%s171 + $0x150] sm:%s164]
              %202 = vst [vmem:[%s172 + $0x150] sm:%s164] %v201
              %v203 = vld [vmem:[%s171 + $0x168] sm:%s164]
              %204 = vst [vmem:[%s172 + $0x168] sm:%s164] %v203
              %v205 = vld [vmem:[%s171 + $0x180] sm:%s164]
              %206 = vst [vmem:[%s172 + $0x180] sm:%s164] %v205
              %v207 = vld [vmem:[%s171 + $0x198] sm:%s164]
              %208 = vst [vmem:[%s172 + $0x198] sm:%s164] %v207
            $region45: #{tpu_custom_call.1} parent=39 // loop_footer
              %s170 = sadd.s32 1, %s166
            $region46: #{tpu_custom_call.1} parent=39 // loop_footer_branch
              %165 = sbr.rel target = $region42
            $region47: #{tpu_custom_call.1} parent=39 // loop_exit
              _
          $region40: #{tpu_custom_call.1} parent=31 // pred_fallthru
            _
          // Predicated region
          $region66: #{tpu_custom_call.1} parent=31 // pred_check
            _
          $region67: #{tpu_custom_call.1} parent=31 // pred_check_branch
            %346 = sbr.rel (0) target = $region69
          $region68: #{tpu_custom_call.1} parent=31 // pred_region
            %347 = vsyncadd [#allocation3], 5184
          $region69: #{tpu_custom_call.1} parent=31 // pred_fallthru
            _
        $region32: #{tpu_custom_call.1} parent=27 // pred_fallthru
          _
        %s348 = scalar_lea.sflag [#allocation3], %s149
        %s349 = smul.u32 18, 18
        %s350 = smul.u32 %s349, 1
        %s351 = sshll.u32 %s350, 4
        %352 = dma.done %s348, %s351
        %s353 = smul.u32 %s149, 432
        %s354 = scalar_lea.vmem [#allocation2], %s353
        %v355 = vld [vmem:[%s354] sm:$0xff]
        %v356 = vld [vmem:[%s354 + $0x8] sm:$0xff]
        %v357 = vld [vmem:[%s354 + $0x18] sm:$0xff]
        %v358 = vld [vmem:[%s354 + $0x20] sm:$0xff]
        %v359 = vld [vmem:[%s354 + $0x30] sm:$0xff]
        %v360 = vld [vmem:[%s354 + $0x38] sm:$0xff]
        %v361 = vld [vmem:[%s354 + $0x48] sm:$0xff]
        %v362 = vld [vmem:[%s354 + $0x50] sm:$0xff]
        %v363 = vld [vmem:[%s354 + $0x60] sm:$0xff]
        %v364 = vld [vmem:[%s354 + $0x68] sm:$0xff]
        %v365 = vld [vmem:[%s354 + $0x78] sm:$0xff]
        %v366 = vld [vmem:[%s354 + $0x80] sm:$0xff]
        %v367 = vld [vmem:[%s354 + $0x90] sm:$0xff]
        %v368 = vld [vmem:[%s354 + $0x98] sm:$0xff]
        %v369 = vld [vmem:[%s354 + $0xa8] sm:$0xff]
        %v370 = vld [vmem:[%s354 + $0xb0] sm:$0xff]
        %v371 = vld [vmem:[%s354 + $0xc0] sm:$0xff]
        %v372 = vld [vmem:[%s354 + $0xc8] sm:$0xff]
        %v373 = vld [vmem:[%s354 + $0xd8] sm:$0xff]
        %v374 = vld [vmem:[%s354 + $0xe0] sm:$0xff]
        %v375 = vld [vmem:[%s354 + $0xf0] sm:$0xff]
        %v376 = vld [vmem:[%s354 + $0xf8] sm:$0xff]
        %v377 = vld [vmem:[%s354 + $0x108] sm:$0xff]
        %v378 = vld [vmem:[%s354 + $0x110] sm:$0xff]
        %v379 = vld [vmem:[%s354 + $0x120] sm:$0xff]
        %v380 = vld [vmem:[%s354 + $0x128] sm:$0xff]
        %v381 = vld [vmem:[%s354 + $0x138] sm:$0xff]
        %v382 = vld [vmem:[%s354 + $0x140] sm:$0xff]
        %v383 = vld [vmem:[%s354 + $0x150] sm:$0xff]
        %v384 = vld [vmem:[%s354 + $0x158] sm:$0xff]
        %v385 = vld [vmem:[%s354 + $0x168] sm:$0xff]
        %v386 = vld [vmem:[%s354 + $0x170] sm:$0xff]
        %v387 = vld [vmem:[%s1] sm:$0x1]
        %v388 = vlaneseq
        %v389 = vshrl.u32 %v388, 7
        %v390 = vsub.s32 0, %v389
        %v391 = vrot.slane %v387, %v390
        %v392 = vmul.f32 %v355, %v391
        %v393 = vmul.f32 %v356, %v391
        %v394 = vmul.f32 %v357, %v391
        %v395 = vmul.f32 %v358, %v391
        %v396 = vmul.f32 %v359, %v391
        %v397 = vmul.f32 %v360, %v391
        %v398 = vmul.f32 %v361, %v391
        %v399 = vmul.f32 %v362, %v391
        %v400 = vmul.f32 %v363, %v391
        %v401 = vmul.f32 %v364, %v391
        %v402 = vmul.f32 %v365, %v391
        %v403 = vmul.f32 %v366, %v391
        %v404 = vmul.f32 %v367, %v391
        %v405 = vmul.f32 %v368, %v391
        %v406 = vmul.f32 %v369, %v391
        %v407 = vmul.f32 %v370, %v391
        %v408 = vmul.f32 %v371, %v391
        %v409 = vmul.f32 %v372, %v391
        %v410 = vmul.f32 %v373, %v391
        %v411 = vmul.f32 %v374, %v391
        %v412 = vmul.f32 %v375, %v391
        %v413 = vmul.f32 %v376, %v391
        %v414 = vmul.f32 %v377, %v391
        %v415 = vmul.f32 %v378, %v391
        %v416 = vmul.f32 %v379, %v391
        %v417 = vmul.f32 %v380, %v391
        %v418 = vmul.f32 %v381, %v391
        %v419 = vmul.f32 %v382, %v391
        %v420 = vmul.f32 %v383, %v391
        %v421 = vmul.f32 %v384, %v391
        %v422 = vmul.f32 %v385, %v391
        %v423 = vmul.f32 %v386, %v391
        %v424 = vld [vmem:[%s354 + $0x1] sm:$0xff]
        %v425 = vld [vmem:[%s354 + $0x9] sm:$0xff]
        %v426 = vld [vmem:[%s354 + $0x19] sm:$0xff]
        %v427 = vld [vmem:[%s354 + $0x21] sm:$0xff]
        %v428 = vld [vmem:[%s354 + $0x31] sm:$0xff]
        %v429 = vld [vmem:[%s354 + $0x39] sm:$0xff]
        %v430 = vld [vmem:[%s354 + $0x49] sm:$0xff]
        %v431 = vld [vmem:[%s354 + $0x51] sm:$0xff]
        %v432 = vld [vmem:[%s354 + $0x61] sm:$0xff]
        %v433 = vld [vmem:[%s354 + $0x69] sm:$0xff]
        %v434 = vld [vmem:[%s354 + $0x79] sm:$0xff]
        %v435 = vld [vmem:[%s354 + $0x81] sm:$0xff]
        %v436 = vld [vmem:[%s354 + $0x91] sm:$0xff]
        %v437 = vld [vmem:[%s354 + $0x99] sm:$0xff]
        %v438 = vld [vmem:[%s354 + $0xa9] sm:$0xff]
        %v439 = vld [vmem:[%s354 + $0xb1] sm:$0xff]
        %v440 = vld [vmem:[%s354 + $0xc1] sm:$0xff]
        %v441 = vld [vmem:[%s354 + $0xc9] sm:$0xff]
        %v442 = vld [vmem:[%s354 + $0xd9] sm:$0xff]
        %v443 = vld [vmem:[%s354 + $0xe1] sm:$0xff]
        %v444 = vld [vmem:[%s354 + $0xf1] sm:$0xff]
        %v445 = vld [vmem:[%s354 + $0xf9] sm:$0xff]
        %v446 = vld [vmem:[%s354 + $0x109] sm:$0xff]
        %v447 = vld [vmem:[%s354 + $0x111] sm:$0xff]
        %v448 = vld [vmem:[%s354 + $0x121] sm:$0xff]
        %v449 = vld [vmem:[%s354 + $0x129] sm:$0xff]
        %v450 = vld [vmem:[%s354 + $0x139] sm:$0xff]
        %v451 = vld [vmem:[%s354 + $0x141] sm:$0xff]
        %v452 = vld [vmem:[%s354 + $0x151] sm:$0xff]
        %v453 = vld [vmem:[%s354 + $0x159] sm:$0xff]
        %v454 = vld [vmem:[%s354 + $0x169] sm:$0xff]
        %v455 = vld [vmem:[%s354 + $0x171] sm:$0xff]
        %v456 = vld [vmem:[%s1 + $0x1] sm:$0x1]
        %v457 = vlaneseq
        %v458 = vshrl.u32 %v457, 7
        %v459 = vsub.s32 0, %v458
        %v460 = vrot.slane %v456, %v459
        %v461 = vmul.f32 %v424, %v460
        %v462 = vmul.f32 %v425, %v460
        %v463 = vmul.f32 %v426, %v460
        %v464 = vmul.f32 %v427, %v460
        %v465 = vmul.f32 %v428, %v460
        %v466 = vmul.f32 %v429, %v460
        %v467 = vmul.f32 %v430, %v460
        %v468 = vmul.f32 %v431, %v460
        %v469 = vmul.f32 %v432, %v460
        %v470 = vmul.f32 %v433, %v460
        %v471 = vmul.f32 %v434, %v460
        %v472 = vmul.f32 %v435, %v460
        %v473 = vmul.f32 %v436, %v460
        %v474 = vmul.f32 %v437, %v460
        %v475 = vmul.f32 %v438, %v460
        %v476 = vmul.f32 %v439, %v460
        %v477 = vmul.f32 %v440, %v460
        %v478 = vmul.f32 %v441, %v460
        %v479 = vmul.f32 %v442, %v460
        %v480 = vmul.f32 %v443, %v460
        %v481 = vmul.f32 %v444, %v460
        %v482 = vmul.f32 %v445, %v460
        %v483 = vmul.f32 %v446, %v460
        %v484 = vmul.f32 %v447, %v460
        %v485 = vmul.f32 %v448, %v460
        %v486 = vmul.f32 %v449, %v460
        %v487 = vmul.f32 %v450, %v460
        %v488 = vmul.f32 %v451, %v460
        %v489 = vmul.f32 %v452, %v460
        %v490 = vmul.f32 %v453, %v460
        %v491 = vmul.f32 %v454, %v460
        %v492 = vmul.f32 %v455, %v460
        %v493 = vadd.f32 %v392, %v461
        %v494 = vadd.f32 %v393, %v462
        %v495 = vadd.f32 %v394, %v463
        %v496 = vadd.f32 %v395, %v464
        %v497 = vadd.f32 %v396, %v465
        %v498 = vadd.f32 %v397, %v466
        %v499 = vadd.f32 %v398, %v467
        %v500 = vadd.f32 %v399, %v468
        %v501 = vadd.f32 %v400, %v469
        %v502 = vadd.f32 %v401, %v470
        %v503 = vadd.f32 %v402, %v471
        %v504 = vadd.f32 %v403, %v472
        %v505 = vadd.f32 %v404, %v473
        %v506 = vadd.f32 %v405, %v474
        %v507 = vadd.f32 %v406, %v475
        %v508 = vadd.f32 %v407, %v476
        %v509 = vadd.f32 %v408, %v477
        %v510 = vadd.f32 %v409, %v478
        %v511 = vadd.f32 %v410, %v479
        %v512 = vadd.f32 %v411, %v480
        %v513 = vadd.f32 %v412, %v481
        %v514 = vadd.f32 %v413, %v482
        %v515 = vadd.f32 %v414, %v483
        %v516 = vadd.f32 %v415, %v484
        %v517 = vadd.f32 %v416, %v485
        %v518 = vadd.f32 %v417, %v486
        %v519 = vadd.f32 %v418, %v487
        %v520 = vadd.f32 %v419, %v488
        %v521 = vadd.f32 %v420, %v489
        %v522 = vadd.f32 %v421, %v490
        %v523 = vadd.f32 %v422, %v491
        %v524 = vadd.f32 %v423, %v492
        %v525 = vld [vmem:[%s354 + $0x2] sm:$0xff]
        %v526 = vld [vmem:[%s354 + $0xa] sm:$0xff]
        %v527 = vld [vmem:[%s354 + $0x1a] sm:$0xff]
        %v528 = vld [vmem:[%s354 + $0x22] sm:$0xff]
        %v529 = vld [vmem:[%s354 + $0x32] sm:$0xff]
        %v530 = vld [vmem:[%s354 + $0x3a] sm:$0xff]
        %v531 = vld [vmem:[%s354 + $0x4a] sm:$0xff]
        %v532 = vld [vmem:[%s354 + $0x52] sm:$0xff]
        %v533 = vld [vmem:[%s354 + $0x62] sm:$0xff]
        %v534 = vld [vmem:[%s354 + $0x6a] sm:$0xff]
        %v535 = vld [vmem:[%s354 + $0x7a] sm:$0xff]
        %v536 = vld [vmem:[%s354 + $0x82] sm:$0xff]
        %v537 = vld [vmem:[%s354 + $0x92] sm:$0xff]
        %v538 = vld [vmem:[%s354 + $0x9a] sm:$0xff]
        %v539 = vld [vmem:[%s354 + $0xaa] sm:$0xff]
        %v540 = vld [vmem:[%s354 + $0xb2] sm:$0xff]
        %v541 = vld [vmem:[%s354 + $0xc2] sm:$0xff]
        %v542 = vld [vmem:[%s354 + $0xca] sm:$0xff]
        %v543 = vld [vmem:[%s354 + $0xda] sm:$0xff]
        %v544 = vld [vmem:[%s354 + $0xe2] sm:$0xff]
        %v545 = vld [vmem:[%s354 + $0xf2] sm:$0xff]
        %v546 = vld [vmem:[%s354 + $0xfa] sm:$0xff]
        %v547 = vld [vmem:[%s354 + $0x10a] sm:$0xff]
        %v548 = vld [vmem:[%s354 + $0x112] sm:$0xff]
        %v549 = vld [vmem:[%s354 + $0x122] sm:$0xff]
        %v550 = vld [vmem:[%s354 + $0x12a] sm:$0xff]
        %v551 = vld [vmem:[%s354 + $0x13a] sm:$0xff]
        %v552 = vld [vmem:[%s354 + $0x142] sm:$0xff]
        %v553 = vld [vmem:[%s354 + $0x152] sm:$0xff]
        %v554 = vld [vmem:[%s354 + $0x15a] sm:$0xff]
        %v555 = vld [vmem:[%s354 + $0x16a] sm:$0xff]
        %v556 = vld [vmem:[%s354 + $0x172] sm:$0xff]
        %v557 = vld [vmem:[%s1 + $0x2] sm:$0x1]
        %v558 = vlaneseq
        %v559 = vshrl.u32 %v558, 7
        %v560 = vsub.s32 0, %v559
        %v561 = vrot.slane %v557, %v560
        %v562 = vmul.f32 %v525, %v561
        %v563 = vmul.f32 %v526, %v561
        %v564 = vmul.f32 %v527, %v561
        %v565 = vmul.f32 %v528, %v561
        %v566 = vmul.f32 %v529, %v561
        %v567 = vmul.f32 %v530, %v561
        %v568 = vmul.f32 %v531, %v561
        %v569 = vmul.f32 %v532, %v561
        %v570 = vmul.f32 %v533, %v561
        %v571 = vmul.f32 %v534, %v561
        %v572 = vmul.f32 %v535, %v561
        %v573 = vmul.f32 %v536, %v561
        %v574 = vmul.f32 %v537, %v561
        %v575 = vmul.f32 %v538, %v561
        %v576 = vmul.f32 %v539, %v561
        %v577 = vmul.f32 %v540, %v561
        %v578 = vmul.f32 %v541, %v561
        %v579 = vmul.f32 %v542, %v561
        %v580 = vmul.f32 %v543, %v561
        %v581 = vmul.f32 %v544, %v561
        %v582 = vmul.f32 %v545, %v561
        %v583 = vmul.f32 %v546, %v561
        %v584 = vmul.f32 %v547, %v561
        %v585 = vmul.f32 %v548, %v561
        %v586 = vmul.f32 %v549, %v561
        %v587 = vmul.f32 %v550, %v561
        %v588 = vmul.f32 %v551, %v561
        %v589 = vmul.f32 %v552, %v561
        %v590 = vmul.f32 %v553, %v561
        %v591 = vmul.f32 %v554, %v561
        %v592 = vmul.f32 %v555, %v561
        %v593 = vmul.f32 %v556, %v561
        %v594 = vadd.f32 %v493, %v562
        %v595 = vadd.f32 %v494, %v563
        %v596 = vadd.f32 %v495, %v564
        %v597 = vadd.f32 %v496, %v565
        %v598 = vadd.f32 %v497, %v566
        %v599 = vadd.f32 %v498, %v567
        %v600 = vadd.f32 %v499, %v568
        %v601 = vadd.f32 %v500, %v569
        %v602 = vadd.f32 %v501, %v570
        %v603 = vadd.f32 %v502, %v571
        %v604 = vadd.f32 %v503, %v572
        %v605 = vadd.f32 %v504, %v573
        %v606 = vadd.f32 %v505, %v574
        %v607 = vadd.f32 %v506, %v575
        %v608 = vadd.f32 %v507, %v576
        %v609 = vadd.f32 %v508, %v577
        %v610 = vadd.f32 %v509, %v578
        %v611 = vadd.f32 %v510, %v579
        %v612 = vadd.f32 %v511, %v580
        %v613 = vadd.f32 %v512, %v581
        %v614 = vadd.f32 %v513, %v582
        %v615 = vadd.f32 %v514, %v583
        %v616 = vadd.f32 %v515, %v584
        %v617 = vadd.f32 %v516, %v585
        %v618 = vadd.f32 %v517, %v586
        %v619 = vadd.f32 %v518, %v587
        %v620 = vadd.f32 %v519, %v588
        %v621 = vadd.f32 %v520, %v589
        %v622 = vadd.f32 %v521, %v590
        %v623 = vadd.f32 %v522, %v591
        %v624 = vadd.f32 %v523, %v592
        %v625 = vadd.f32 %v524, %v593
        %s626 = sadd.s32 24, %s353
        %s627 = scalar_lea.vmem [#allocation2], %s626
        %v628 = vld [vmem:[%s627] sm:$0xff]
        %v629 = vld [vmem:[%s627 + $0x8] sm:$0xff]
        %v630 = vld [vmem:[%s627 + $0x18] sm:$0xff]
        %v631 = vld [vmem:[%s627 + $0x20] sm:$0xff]
        %v632 = vld [vmem:[%s627 + $0x30] sm:$0xff]
        %v633 = vld [vmem:[%s627 + $0x38] sm:$0xff]
        %v634 = vld [vmem:[%s627 + $0x48] sm:$0xff]
        %v635 = vld [vmem:[%s627 + $0x50] sm:$0xff]
        %v636 = vld [vmem:[%s627 + $0x60] sm:$0xff]
        %v637 = vld [vmem:[%s627 + $0x68] sm:$0xff]
        %v638 = vld [vmem:[%s627 + $0x78] sm:$0xff]
        %v639 = vld [vmem:[%s627 + $0x80] sm:$0xff]
        %v640 = vld [vmem:[%s627 + $0x90] sm:$0xff]
        %v641 = vld [vmem:[%s627 + $0x98] sm:$0xff]
        %v642 = vld [vmem:[%s627 + $0xa8] sm:$0xff]
        %v643 = vld [vmem:[%s627 + $0xb0] sm:$0xff]
        %v644 = vld [vmem:[%s627 + $0xc0] sm:$0xff]
        %v645 = vld [vmem:[%s627 + $0xc8] sm:$0xff]
        %v646 = vld [vmem:[%s627 + $0xd8] sm:$0xff]
        %v647 = vld [vmem:[%s627 + $0xe0] sm:$0xff]
        %v648 = vld [vmem:[%s627 + $0xf0] sm:$0xff]
        %v649 = vld [vmem:[%s627 + $0xf8] sm:$0xff]
        %v650 = vld [vmem:[%s627 + $0x108] sm:$0xff]
        %v651 = vld [vmem:[%s627 + $0x110] sm:$0xff]
        %v652 = vld [vmem:[%s627 + $0x120] sm:$0xff]
        %v653 = vld [vmem:[%s627 + $0x128] sm:$0xff]
        %v654 = vld [vmem:[%s627 + $0x138] sm:$0xff]
        %v655 = vld [vmem:[%s627 + $0x140] sm:$0xff]
        %v656 = vld [vmem:[%s627 + $0x150] sm:$0xff]
        %v657 = vld [vmem:[%s627 + $0x158] sm:$0xff]
        %v658 = vld [vmem:[%s627 + $0x168] sm:$0xff]
        %v659 = vld [vmem:[%s627 + $0x170] sm:$0xff]
        %s660 = scalar_lea.vmem %s1, 4
        %v661 = vld [vmem:[%s660] sm:$0x1]
        %v662 = vlaneseq
        %v663 = vshrl.u32 %v662, 7
        %v664 = vsub.s32 0, %v663
        %v665 = vrot.slane %v661, %v664
        %v666 = vmul.f32 %v628, %v665
        %v667 = vmul.f32 %v629, %v665
        %v668 = vmul.f32 %v630, %v665
        %v669 = vmul.f32 %v631, %v665
        %v670 = vmul.f32 %v632, %v665
        %v671 = vmul.f32 %v633, %v665
        %v672 = vmul.f32 %v634, %v665
        %v673 = vmul.f32 %v635, %v665
        %v674 = vmul.f32 %v636, %v665
        %v675 = vmul.f32 %v637, %v665
        %v676 = vmul.f32 %v638, %v665
        %v677 = vmul.f32 %v639, %v665
        %v678 = vmul.f32 %v640, %v665
        %v679 = vmul.f32 %v641, %v665
        %v680 = vmul.f32 %v642, %v665
        %v681 = vmul.f32 %v643, %v665
        %v682 = vmul.f32 %v644, %v665
        %v683 = vmul.f32 %v645, %v665
        %v684 = vmul.f32 %v646, %v665
        %v685 = vmul.f32 %v647, %v665
        %v686 = vmul.f32 %v648, %v665
        %v687 = vmul.f32 %v649, %v665
        %v688 = vmul.f32 %v650, %v665
        %v689 = vmul.f32 %v651, %v665
        %v690 = vmul.f32 %v652, %v665
        %v691 = vmul.f32 %v653, %v665
        %v692 = vmul.f32 %v654, %v665
        %v693 = vmul.f32 %v655, %v665
        %v694 = vmul.f32 %v656, %v665
        %v695 = vmul.f32 %v657, %v665
        %v696 = vmul.f32 %v658, %v665
        %v697 = vmul.f32 %v659, %v665
        %v698 = vadd.f32 %v594, %v666
        %v699 = vadd.f32 %v595, %v667
        %v700 = vadd.f32 %v596, %v668
        %v701 = vadd.f32 %v597, %v669
        %v702 = vadd.f32 %v598, %v670
        %v703 = vadd.f32 %v599, %v671
        %v704 = vadd.f32 %v600, %v672
        %v705 = vadd.f32 %v601, %v673
        %v706 = vadd.f32 %v602, %v674
        %v707 = vadd.f32 %v603, %v675
        %v708 = vadd.f32 %v604, %v676
        %v709 = vadd.f32 %v605, %v677
        %v710 = vadd.f32 %v606, %v678
        %v711 = vadd.f32 %v607, %v679
        %v712 = vadd.f32 %v608, %v680
        %v713 = vadd.f32 %v609, %v681
        %v714 = vadd.f32 %v610, %v682
        %v715 = vadd.f32 %v611, %v683
        %v716 = vadd.f32 %v612, %v684
        %v717 = vadd.f32 %v613, %v685
        %v718 = vadd.f32 %v614, %v686
        %v719 = vadd.f32 %v615, %v687
        %v720 = vadd.f32 %v616, %v688
        %v721 = vadd.f32 %v617, %v689
        %v722 = vadd.f32 %v618, %v690
        %v723 = vadd.f32 %v619, %v691
        %v724 = vadd.f32 %v620, %v692
        %v725 = vadd.f32 %v621, %v693
        %v726 = vadd.f32 %v622, %v694
        %v727 = vadd.f32 %v623, %v695
        %v728 = vadd.f32 %v624, %v696
        %v729 = vadd.f32 %v625, %v697
        %v730 = vld [vmem:[%s627 + $0x1] sm:$0xff]
        %v731 = vld [vmem:[%s627 + $0x9] sm:$0xff]
        %v732 = vld [vmem:[%s627 + $0x19] sm:$0xff]
        %v733 = vld [vmem:[%s627 + $0x21] sm:$0xff]
        %v734 = vld [vmem:[%s627 + $0x31] sm:$0xff]
        %v735 = vld [vmem:[%s627 + $0x39] sm:$0xff]
        %v736 = vld [vmem:[%s627 + $0x49] sm:$0xff]
        %v737 = vld [vmem:[%s627 + $0x51] sm:$0xff]
        %v738 = vld [vmem:[%s627 + $0x61] sm:$0xff]
        %v739 = vld [vmem:[%s627 + $0x69] sm:$0xff]
        %v740 = vld [vmem:[%s627 + $0x79] sm:$0xff]
        %v741 = vld [vmem:[%s627 + $0x81] sm:$0xff]
        %v742 = vld [vmem:[%s627 + $0x91] sm:$0xff]
        %v743 = vld [vmem:[%s627 + $0x99] sm:$0xff]
        %v744 = vld [vmem:[%s627 + $0xa9] sm:$0xff]
        %v745 = vld [vmem:[%s627 + $0xb1] sm:$0xff]
        %v746 = vld [vmem:[%s627 + $0xc1] sm:$0xff]
        %v747 = vld [vmem:[%s627 + $0xc9] sm:$0xff]
        %v748 = vld [vmem:[%s627 + $0xd9] sm:$0xff]
        %v749 = vld [vmem:[%s627 + $0xe1] sm:$0xff]
        %v750 = vld [vmem:[%s627 + $0xf1] sm:$0xff]
        %v751 = vld [vmem:[%s627 + $0xf9] sm:$0xff]
        %v752 = vld [vmem:[%s627 + $0x109] sm:$0xff]
        %v753 = vld [vmem:[%s627 + $0x111] sm:$0xff]
        %v754 = vld [vmem:[%s627 + $0x121] sm:$0xff]
        %v755 = vld [vmem:[%s627 + $0x129] sm:$0xff]
        %v756 = vld [vmem:[%s627 + $0x139] sm:$0xff]
        %v757 = vld [vmem:[%s627 + $0x141] sm:$0xff]
        %v758 = vld [vmem:[%s627 + $0x151] sm:$0xff]
        %v759 = vld [vmem:[%s627 + $0x159] sm:$0xff]
        %v760 = vld [vmem:[%s627 + $0x169] sm:$0xff]
        %v761 = vld [vmem:[%s627 + $0x171] sm:$0xff]
        %v762 = vld [vmem:[%s660 + $0x1] sm:$0x1]
        %v763 = vlaneseq
        %v764 = vshrl.u32 %v763, 7
        %v765 = vsub.s32 0, %v764
        %v766 = vrot.slane %v762, %v765
        %v767 = vmul.f32 %v730, %v766
        %v768 = vmul.f32 %v731, %v766
        %v769 = vmul.f32 %v732, %v766
        %v770 = vmul.f32 %v733, %v766
        %v771 = vmul.f32 %v734, %v766
        %v772 = vmul.f32 %v735, %v766
        %v773 = vmul.f32 %v736, %v766
        %v774 = vmul.f32 %v737, %v766
        %v775 = vmul.f32 %v738, %v766
        %v776 = vmul.f32 %v739, %v766
        %v777 = vmul.f32 %v740, %v766
        %v778 = vmul.f32 %v741, %v766
        %v779 = vmul.f32 %v742, %v766
        %v780 = vmul.f32 %v743, %v766
        %v781 = vmul.f32 %v744, %v766
        %v782 = vmul.f32 %v745, %v766
        %v783 = vmul.f32 %v746, %v766
        %v784 = vmul.f32 %v747, %v766
        %v785 = vmul.f32 %v748, %v766
        %v786 = vmul.f32 %v749, %v766
        %v787 = vmul.f32 %v750, %v766
        %v788 = vmul.f32 %v751, %v766
        %v789 = vmul.f32 %v752, %v766
        %v790 = vmul.f32 %v753, %v766
        %v791 = vmul.f32 %v754, %v766
        %v792 = vmul.f32 %v755, %v766
        %v793 = vmul.f32 %v756, %v766
        %v794 = vmul.f32 %v757, %v766
        %v795 = vmul.f32 %v758, %v766
        %v796 = vmul.f32 %v759, %v766
        %v797 = vmul.f32 %v760, %v766
        %v798 = vmul.f32 %v761, %v766
        %v799 = vadd.f32 %v698, %v767
        %v800 = vadd.f32 %v699, %v768
        %v801 = vadd.f32 %v700, %v769
        %v802 = vadd.f32 %v701, %v770
        %v803 = vadd.f32 %v702, %v771
        %v804 = vadd.f32 %v703, %v772
        %v805 = vadd.f32 %v704, %v773
        %v806 = vadd.f32 %v705, %v774
        %v807 = vadd.f32 %v706, %v775
        %v808 = vadd.f32 %v707, %v776
        %v809 = vadd.f32 %v708, %v777
        %v810 = vadd.f32 %v709, %v778
        %v811 = vadd.f32 %v710, %v779
        %v812 = vadd.f32 %v711, %v780
        %v813 = vadd.f32 %v712, %v781
        %v814 = vadd.f32 %v713, %v782
        %v815 = vadd.f32 %v714, %v783
        %v816 = vadd.f32 %v715, %v784
        %v817 = vadd.f32 %v716, %v785
        %v818 = vadd.f32 %v717, %v786
        %v819 = vadd.f32 %v718, %v787
        %v820 = vadd.f32 %v719, %v788
        %v821 = vadd.f32 %v720, %v789
        %v822 = vadd.f32 %v721, %v790
        %v823 = vadd.f32 %v722, %v791
        %v824 = vadd.f32 %v723, %v792
        %v825 = vadd.f32 %v724, %v793
        %v826 = vadd.f32 %v725, %v794
        %v827 = vadd.f32 %v726, %v795
        %v828 = vadd.f32 %v727, %v796
        %v829 = vadd.f32 %v728, %v797
        %v830 = vadd.f32 %v729, %v798
        %v831 = vld [vmem:[%s627 + $0x2] sm:$0xff]
        %v832 = vld [vmem:[%s627 + $0xa] sm:$0xff]
        %v833 = vld [vmem:[%s627 + $0x1a] sm:$0xff]
        %v834 = vld [vmem:[%s627 + $0x22] sm:$0xff]
        %v835 = vld [vmem:[%s627 + $0x32] sm:$0xff]
        %v836 = vld [vmem:[%s627 + $0x3a] sm:$0xff]
        %v837 = vld [vmem:[%s627 + $0x4a] sm:$0xff]
        %v838 = vld [vmem:[%s627 + $0x52] sm:$0xff]
        %v839 = vld [vmem:[%s627 + $0x62] sm:$0xff]
        %v840 = vld [vmem:[%s627 + $0x6a] sm:$0xff]
        %v841 = vld [vmem:[%s627 + $0x7a] sm:$0xff]
        %v842 = vld [vmem:[%s627 + $0x82] sm:$0xff]
        %v843 = vld [vmem:[%s627 + $0x92] sm:$0xff]
        %v844 = vld [vmem:[%s627 + $0x9a] sm:$0xff]
        %v845 = vld [vmem:[%s627 + $0xaa] sm:$0xff]
        %v846 = vld [vmem:[%s627 + $0xb2] sm:$0xff]
        %v847 = vld [vmem:[%s627 + $0xc2] sm:$0xff]
        %v848 = vld [vmem:[%s627 + $0xca] sm:$0xff]
        %v849 = vld [vmem:[%s627 + $0xda] sm:$0xff]
        %v850 = vld [vmem:[%s627 + $0xe2] sm:$0xff]
        %v851 = vld [vmem:[%s627 + $0xf2] sm:$0xff]
        %v852 = vld [vmem:[%s627 + $0xfa] sm:$0xff]
        %v853 = vld [vmem:[%s627 + $0x10a] sm:$0xff]
        %v854 = vld [vmem:[%s627 + $0x112] sm:$0xff]
        %v855 = vld [vmem:[%s627 + $0x122] sm:$0xff]
        %v856 = vld [vmem:[%s627 + $0x12a] sm:$0xff]
        %v857 = vld [vmem:[%s627 + $0x13a] sm:$0xff]
        %v858 = vld [vmem:[%s627 + $0x142] sm:$0xff]
        %v859 = vld [vmem:[%s627 + $0x152] sm:$0xff]
        %v860 = vld [vmem:[%s627 + $0x15a] sm:$0xff]
        %v861 = vld [vmem:[%s627 + $0x16a] sm:$0xff]
        %v862 = vld [vmem:[%s627 + $0x172] sm:$0xff]
        %v863 = vld [vmem:[%s660 + $0x2] sm:$0x1]
        %v864 = vlaneseq
        %v865 = vshrl.u32 %v864, 7
        %v866 = vsub.s32 0, %v865
        %v867 = vrot.slane %v863, %v866
        %v868 = vmul.f32 %v831, %v867
        %v869 = vmul.f32 %v832, %v867
        %v870 = vmul.f32 %v833, %v867
        %v871 = vmul.f32 %v834, %v867
        %v872 = vmul.f32 %v835, %v867
        %v873 = vmul.f32 %v836, %v867
        %v874 = vmul.f32 %v837, %v867
        %v875 = vmul.f32 %v838, %v867
        %v876 = vmul.f32 %v839, %v867
        %v877 = vmul.f32 %v840, %v867
        %v878 = vmul.f32 %v841, %v867
        %v879 = vmul.f32 %v842, %v867
        %v880 = vmul.f32 %v843, %v867
        %v881 = vmul.f32 %v844, %v867
        %v882 = vmul.f32 %v845, %v867
        %v883 = vmul.f32 %v846, %v867
        %v884 = vmul.f32 %v847, %v867
        %v885 = vmul.f32 %v848, %v867
        %v886 = vmul.f32 %v849, %v867
        %v887 = vmul.f32 %v850, %v867
        %v888 = vmul.f32 %v851, %v867
        %v889 = vmul.f32 %v852, %v867
        %v890 = vmul.f32 %v853, %v867
        %v891 = vmul.f32 %v854, %v867
        %v892 = vmul.f32 %v855, %v867
        %v893 = vmul.f32 %v856, %v867
        %v894 = vmul.f32 %v857, %v867
        %v895 = vmul.f32 %v858, %v867
        %v896 = vmul.f32 %v859, %v867
        %v897 = vmul.f32 %v860, %v867
        %v898 = vmul.f32 %v861, %v867
        %v899 = vmul.f32 %v862, %v867
        %v900 = vadd.f32 %v799, %v868
        %v901 = vadd.f32 %v800, %v869
        %v902 = vadd.f32 %v801, %v870
        %v903 = vadd.f32 %v802, %v871
        %v904 = vadd.f32 %v803, %v872
        %v905 = vadd.f32 %v804, %v873
        %v906 = vadd.f32 %v805, %v874
        %v907 = vadd.f32 %v806, %v875
        %v908 = vadd.f32 %v807, %v876
        %v909 = vadd.f32 %v808, %v877
        %v910 = vadd.f32 %v809, %v878
        %v911 = vadd.f32 %v810, %v879
        %v912 = vadd.f32 %v811, %v880
        %v913 = vadd.f32 %v812, %v881
        %v914 = vadd.f32 %v813, %v882
        %v915 = vadd.f32 %v814, %v883
        %v916 = vadd.f32 %v815, %v884
        %v917 = vadd.f32 %v816, %v885
        %v918 = vadd.f32 %v817, %v886
        %v919 = vadd.f32 %v818, %v887
        %v920 = vadd.f32 %v819, %v888
        %v921 = vadd.f32 %v820, %v889
        %v922 = vadd.f32 %v821, %v890
        %v923 = vadd.f32 %v822, %v891
        %v924 = vadd.f32 %v823, %v892
        %v925 = vadd.f32 %v824, %v893
        %v926 = vadd.f32 %v825, %v894
        %v927 = vadd.f32 %v826, %v895
        %v928 = vadd.f32 %v827, %v896
        %v929 = vadd.f32 %v828, %v897
        %v930 = vadd.f32 %v829, %v898
        %v931 = vadd.f32 %v830, %v899
        %s932 = sadd.s32 48, %s353
        %s933 = scalar_lea.vmem [#allocation2], %s932
        %v934 = vld [vmem:[%s933] sm:$0xff]
        %v935 = vld [vmem:[%s933 + $0x8] sm:$0xff]
        %v936 = vld [vmem:[%s933 + $0x18] sm:$0xff]
        %v937 = vld [vmem:[%s933 + $0x20] sm:$0xff]
        %v938 = vld [vmem:[%s933 + $0x30] sm:$0xff]
        %v939 = vld [vmem:[%s933 + $0x38] sm:$0xff]
        %v940 = vld [vmem:[%s933 + $0x48] sm:$0xff]
        %v941 = vld [vmem:[%s933 + $0x50] sm:$0xff]
        %v942 = vld [vmem:[%s933 + $0x60] sm:$0xff]
        %v943 = vld [vmem:[%s933 + $0x68] sm:$0xff]
        %v944 = vld [vmem:[%s933 + $0x78] sm:$0xff]
        %v945 = vld [vmem:[%s933 + $0x80] sm:$0xff]
        %v946 = vld [vmem:[%s933 + $0x90] sm:$0xff]
        %v947 = vld [vmem:[%s933 + $0x98] sm:$0xff]
        %v948 = vld [vmem:[%s933 + $0xa8] sm:$0xff]
        %v949 = vld [vmem:[%s933 + $0xb0] sm:$0xff]
        %v950 = vld [vmem:[%s933 + $0xc0] sm:$0xff]
        %v951 = vld [vmem:[%s933 + $0xc8] sm:$0xff]
        %v952 = vld [vmem:[%s933 + $0xd8] sm:$0xff]
        %v953 = vld [vmem:[%s933 + $0xe0] sm:$0xff]
        %v954 = vld [vmem:[%s933 + $0xf0] sm:$0xff]
        %v955 = vld [vmem:[%s933 + $0xf8] sm:$0xff]
        %v956 = vld [vmem:[%s933 + $0x108] sm:$0xff]
        %v957 = vld [vmem:[%s933 + $0x110] sm:$0xff]
        %v958 = vld [vmem:[%s933 + $0x120] sm:$0xff]
        %v959 = vld [vmem:[%s933 + $0x128] sm:$0xff]
        %v960 = vld [vmem:[%s933 + $0x138] sm:$0xff]
        %v961 = vld [vmem:[%s933 + $0x140] sm:$0xff]
        %v962 = vld [vmem:[%s933 + $0x150] sm:$0xff]
        %v963 = vld [vmem:[%s933 + $0x158] sm:$0xff]
        %v964 = vld [vmem:[%s933 + $0x168] sm:$0xff]
        %v965 = vld [vmem:[%s933 + $0x170] sm:$0xff]
        %s966 = scalar_lea.vmem %s1, 8
        %v967 = vld [vmem:[%s966] sm:$0x1]
        %v968 = vlaneseq
        %v969 = vshrl.u32 %v968, 7
        %v970 = vsub.s32 0, %v969
        %v971 = vrot.slane %v967, %v970
        %v972 = vmul.f32 %v934, %v971
        %v973 = vmul.f32 %v935, %v971
        %v974 = vmul.f32 %v936, %v971
        %v975 = vmul.f32 %v937, %v971
        %v976 = vmul.f32 %v938, %v971
        %v977 = vmul.f32 %v939, %v971
        %v978 = vmul.f32 %v940, %v971
        %v979 = vmul.f32 %v941, %v971
        %v980 = vmul.f32 %v942, %v971
        %v981 = vmul.f32 %v943, %v971
        %v982 = vmul.f32 %v944, %v971
        %v983 = vmul.f32 %v945, %v971
        %v984 = vmul.f32 %v946, %v971
        %v985 = vmul.f32 %v947, %v971
        %v986 = vmul.f32 %v948, %v971
        %v987 = vmul.f32 %v949, %v971
        %v988 = vmul.f32 %v950, %v971
        %v989 = vmul.f32 %v951, %v971
        %v990 = vmul.f32 %v952, %v971
        %v991 = vmul.f32 %v953, %v971
        %v992 = vmul.f32 %v954, %v971
        %v993 = vmul.f32 %v955, %v971
        %v994 = vmul.f32 %v956, %v971
        %v995 = vmul.f32 %v957, %v971
        %v996 = vmul.f32 %v958, %v971
        %v997 = vmul.f32 %v959, %v971
        %v998 = vmul.f32 %v960, %v971
        %v999 = vmul.f32 %v961, %v971
        %v1000 = vmul.f32 %v962, %v971
        %v1001 = vmul.f32 %v963, %v971
        %v1002 = vmul.f32 %v964, %v971
        %v1003 = vmul.f32 %v965, %v971
        %v1004 = vadd.f32 %v900, %v972
        %v1005 = vadd.f32 %v901, %v973
        %v1006 = vadd.f32 %v902, %v974
        %v1007 = vadd.f32 %v903, %v975
        %v1008 = vadd.f32 %v904, %v976
        %v1009 = vadd.f32 %v905, %v977
        %v1010 = vadd.f32 %v906, %v978
        %v1011 = vadd.f32 %v907, %v979
        %v1012 = vadd.f32 %v908, %v980
        %v1013 = vadd.f32 %v909, %v981
        %v1014 = vadd.f32 %v910, %v982
        %v1015 = vadd.f32 %v911, %v983
        %v1016 = vadd.f32 %v912, %v984
        %v1017 = vadd.f32 %v913, %v985
        %v1018 = vadd.f32 %v914, %v986
        %v1019 = vadd.f32 %v915, %v987
        %v1020 = vadd.f32 %v916, %v988
        %v1021 = vadd.f32 %v917, %v989
        %v1022 = vadd.f32 %v918, %v990
        %v1023 = vadd.f32 %v919, %v991
        %v1024 = vadd.f32 %v920, %v992
        %v1025 = vadd.f32 %v921, %v993
        %v1026 = vadd.f32 %v922, %v994
        %v1027 = vadd.f32 %v923, %v995
        %v1028 = vadd.f32 %v924, %v996
        %v1029 = vadd.f32 %v925, %v997
        %v1030 = vadd.f32 %v926, %v998
        %v1031 = vadd.f32 %v927, %v999
        %v1032 = vadd.f32 %v928, %v1000
        %v1033 = vadd.f32 %v929, %v1001
        %v1034 = vadd.f32 %v930, %v1002
        %v1035 = vadd.f32 %v931, %v1003
        %v1036 = vld [vmem:[%s933 + $0x1] sm:$0xff]
        %v1037 = vld [vmem:[%s933 + $0x9] sm:$0xff]
        %v1038 = vld [vmem:[%s933 + $0x19] sm:$0xff]
        %v1039 = vld [vmem:[%s933 + $0x21] sm:$0xff]
        %v1040 = vld [vmem:[%s933 + $0x31] sm:$0xff]
        %v1041 = vld [vmem:[%s933 + $0x39] sm:$0xff]
        %v1042 = vld [vmem:[%s933 + $0x49] sm:$0xff]
        %v1043 = vld [vmem:[%s933 + $0x51] sm:$0xff]
        %v1044 = vld [vmem:[%s933 + $0x61] sm:$0xff]
        %v1045 = vld [vmem:[%s933 + $0x69] sm:$0xff]
        %v1046 = vld [vmem:[%s933 + $0x79] sm:$0xff]
        %v1047 = vld [vmem:[%s933 + $0x81] sm:$0xff]
        %v1048 = vld [vmem:[%s933 + $0x91] sm:$0xff]
        %v1049 = vld [vmem:[%s933 + $0x99] sm:$0xff]
        %v1050 = vld [vmem:[%s933 + $0xa9] sm:$0xff]
        %v1051 = vld [vmem:[%s933 + $0xb1] sm:$0xff]
        %v1052 = vld [vmem:[%s933 + $0xc1] sm:$0xff]
        %v1053 = vld [vmem:[%s933 + $0xc9] sm:$0xff]
        %v1054 = vld [vmem:[%s933 + $0xd9] sm:$0xff]
        %v1055 = vld [vmem:[%s933 + $0xe1] sm:$0xff]
        %v1056 = vld [vmem:[%s933 + $0xf1] sm:$0xff]
        %v1057 = vld [vmem:[%s933 + $0xf9] sm:$0xff]
        %v1058 = vld [vmem:[%s933 + $0x109] sm:$0xff]
        %v1059 = vld [vmem:[%s933 + $0x111] sm:$0xff]
        %v1060 = vld [vmem:[%s933 + $0x121] sm:$0xff]
        %v1061 = vld [vmem:[%s933 + $0x129] sm:$0xff]
        %v1062 = vld [vmem:[%s933 + $0x139] sm:$0xff]
        %v1063 = vld [vmem:[%s933 + $0x141] sm:$0xff]
        %v1064 = vld [vmem:[%s933 + $0x151] sm:$0xff]
        %v1065 = vld [vmem:[%s933 + $0x159] sm:$0xff]
        %v1066 = vld [vmem:[%s933 + $0x169] sm:$0xff]
        %v1067 = vld [vmem:[%s933 + $0x171] sm:$0xff]
        %v1068 = vld [vmem:[%s966 + $0x1] sm:$0x1]
        %v1069 = vlaneseq
        %v1070 = vshrl.u32 %v1069, 7
        %v1071 = vsub.s32 0, %v1070
        %v1072 = vrot.slane %v1068, %v1071
        %v1073 = vmul.f32 %v1036, %v1072
        %v1074 = vmul.f32 %v1037, %v1072
        %v1075 = vmul.f32 %v1038, %v1072
        %v1076 = vmul.f32 %v1039, %v1072
        %v1077 = vmul.f32 %v1040, %v1072
        %v1078 = vmul.f32 %v1041, %v1072
        %v1079 = vmul.f32 %v1042, %v1072
        %v1080 = vmul.f32 %v1043, %v1072
        %v1081 = vmul.f32 %v1044, %v1072
        %v1082 = vmul.f32 %v1045, %v1072
        %v1083 = vmul.f32 %v1046, %v1072
        %v1084 = vmul.f32 %v1047, %v1072
        %v1085 = vmul.f32 %v1048, %v1072
        %v1086 = vmul.f32 %v1049, %v1072
        %v1087 = vmul.f32 %v1050, %v1072
        %v1088 = vmul.f32 %v1051, %v1072
        %v1089 = vmul.f32 %v1052, %v1072
        %v1090 = vmul.f32 %v1053, %v1072
        %v1091 = vmul.f32 %v1054, %v1072
        %v1092 = vmul.f32 %v1055, %v1072
        %v1093 = vmul.f32 %v1056, %v1072
        %v1094 = vmul.f32 %v1057, %v1072
        %v1095 = vmul.f32 %v1058, %v1072
        %v1096 = vmul.f32 %v1059, %v1072
        %v1097 = vmul.f32 %v1060, %v1072
        %v1098 = vmul.f32 %v1061, %v1072
        %v1099 = vmul.f32 %v1062, %v1072
        %v1100 = vmul.f32 %v1063, %v1072
        %v1101 = vmul.f32 %v1064, %v1072
        %v1102 = vmul.f32 %v1065, %v1072
        %v1103 = vmul.f32 %v1066, %v1072
        %v1104 = vmul.f32 %v1067, %v1072
        %v1105 = vadd.f32 %v1004, %v1073
        %v1106 = vadd.f32 %v1005, %v1074
        %v1107 = vadd.f32 %v1006, %v1075
        %v1108 = vadd.f32 %v1007, %v1076
        %v1109 = vadd.f32 %v1008, %v1077
        %v1110 = vadd.f32 %v1009, %v1078
        %v1111 = vadd.f32 %v1010, %v1079
        %v1112 = vadd.f32 %v1011, %v1080
        %v1113 = vadd.f32 %v1012, %v1081
        %v1114 = vadd.f32 %v1013, %v1082
        %v1115 = vadd.f32 %v1014, %v1083
        %v1116 = vadd.f32 %v1015, %v1084
        %v1117 = vadd.f32 %v1016, %v1085
        %v1118 = vadd.f32 %v1017, %v1086
        %v1119 = vadd.f32 %v1018, %v1087
        %v1120 = vadd.f32 %v1019, %v1088
        %v1121 = vadd.f32 %v1020, %v1089
        %v1122 = vadd.f32 %v1021, %v1090
        %v1123 = vadd.f32 %v1022, %v1091
        %v1124 = vadd.f32 %v1023, %v1092
        %v1125 = vadd.f32 %v1024, %v1093
        %v1126 = vadd.f32 %v1025, %v1094
        %v1127 = vadd.f32 %v1026, %v1095
        %v1128 = vadd.f32 %v1027, %v1096
        %v1129 = vadd.f32 %v1028, %v1097
        %v1130 = vadd.f32 %v1029, %v1098
        %v1131 = vadd.f32 %v1030, %v1099
        %v1132 = vadd.f32 %v1031, %v1100
        %v1133 = vadd.f32 %v1032, %v1101
        %v1134 = vadd.f32 %v1033, %v1102
        %v1135 = vadd.f32 %v1034, %v1103
        %v1136 = vadd.f32 %v1035, %v1104
        %v1137 = vld [vmem:[%s933 + $0x2] sm:$0xff]
        %v1138 = vld [vmem:[%s933 + $0xa] sm:$0xff]
        %v1139 = vld [vmem:[%s933 + $0x1a] sm:$0xff]
        %v1140 = vld [vmem:[%s933 + $0x22] sm:$0xff]
        %v1141 = vld [vmem:[%s933 + $0x32] sm:$0xff]
        %v1142 = vld [vmem:[%s933 + $0x3a] sm:$0xff]
        %v1143 = vld [vmem:[%s933 + $0x4a] sm:$0xff]
        %v1144 = vld [vmem:[%s933 + $0x52] sm:$0xff]
        %v1145 = vld [vmem:[%s933 + $0x62] sm:$0xff]
        %v1146 = vld [vmem:[%s933 + $0x6a] sm:$0xff]
        %v1147 = vld [vmem:[%s933 + $0x7a] sm:$0xff]
        %v1148 = vld [vmem:[%s933 + $0x82] sm:$0xff]
        %v1149 = vld [vmem:[%s933 + $0x92] sm:$0xff]
        %v1150 = vld [vmem:[%s933 + $0x9a] sm:$0xff]
        %v1151 = vld [vmem:[%s933 + $0xaa] sm:$0xff]
        %v1152 = vld [vmem:[%s933 + $0xb2] sm:$0xff]
        %v1153 = vld [vmem:[%s933 + $0xc2] sm:$0xff]
        %v1154 = vld [vmem:[%s933 + $0xca] sm:$0xff]
        %v1155 = vld [vmem:[%s933 + $0xda] sm:$0xff]
        %v1156 = vld [vmem:[%s933 + $0xe2] sm:$0xff]
        %v1157 = vld [vmem:[%s933 + $0xf2] sm:$0xff]
        %v1158 = vld [vmem:[%s933 + $0xfa] sm:$0xff]
        %v1159 = vld [vmem:[%s933 + $0x10a] sm:$0xff]
        %v1160 = vld [vmem:[%s933 + $0x112] sm:$0xff]
        %v1161 = vld [vmem:[%s933 + $0x122] sm:$0xff]
        %v1162 = vld [vmem:[%s933 + $0x12a] sm:$0xff]
        %v1163 = vld [vmem:[%s933 + $0x13a] sm:$0xff]
        %v1164 = vld [vmem:[%s933 + $0x142] sm:$0xff]
        %v1165 = vld [vmem:[%s933 + $0x152] sm:$0xff]
        %v1166 = vld [vmem:[%s933 + $0x15a] sm:$0xff]
        %v1167 = vld [vmem:[%s933 + $0x16a] sm:$0xff]
        %v1168 = vld [vmem:[%s933 + $0x172] sm:$0xff]
        %v1169 = vld [vmem:[%s966 + $0x2] sm:$0x1]
        %v1170 = vlaneseq
        %v1171 = vshrl.u32 %v1170, 7
        %v1172 = vsub.s32 0, %v1171
        %v1173 = vrot.slane %v1169, %v1172
        %v1174 = vmul.f32 %v1137, %v1173
        %v1175 = vmul.f32 %v1138, %v1173
        %v1176 = vmul.f32 %v1139, %v1173
        %v1177 = vmul.f32 %v1140, %v1173
        %v1178 = vmul.f32 %v1141, %v1173
        %v1179 = vmul.f32 %v1142, %v1173
        %v1180 = vmul.f32 %v1143, %v1173
        %v1181 = vmul.f32 %v1144, %v1173
        %v1182 = vmul.f32 %v1145, %v1173
        %v1183 = vmul.f32 %v1146, %v1173
        %v1184 = vmul.f32 %v1147, %v1173
        %v1185 = vmul.f32 %v1148, %v1173
        %v1186 = vmul.f32 %v1149, %v1173
        %v1187 = vmul.f32 %v1150, %v1173
        %v1188 = vmul.f32 %v1151, %v1173
        %v1189 = vmul.f32 %v1152, %v1173
        %v1190 = vmul.f32 %v1153, %v1173
        %v1191 = vmul.f32 %v1154, %v1173
        %v1192 = vmul.f32 %v1155, %v1173
        %v1193 = vmul.f32 %v1156, %v1173
        %v1194 = vmul.f32 %v1157, %v1173
        %v1195 = vmul.f32 %v1158, %v1173
        %v1196 = vmul.f32 %v1159, %v1173
        %v1197 = vmul.f32 %v1160, %v1173
        %v1198 = vmul.f32 %v1161, %v1173
        %v1199 = vmul.f32 %v1162, %v1173
        %v1200 = vmul.f32 %v1163, %v1173
        %v1201 = vmul.f32 %v1164, %v1173
        %v1202 = vmul.f32 %v1165, %v1173
        %v1203 = vmul.f32 %v1166, %v1173
        %v1204 = vmul.f32 %v1167, %v1173
        %v1205 = vmul.f32 %v1168, %v1173
        %v1206 = vadd.f32 %v1105, %v1174
        %v1207 = vadd.f32 %v1106, %v1175
        %v1208 = vadd.f32 %v1107, %v1176
        %v1209 = vadd.f32 %v1108, %v1177
        %v1210 = vadd.f32 %v1109, %v1178
        %v1211 = vadd.f32 %v1110, %v1179
        %v1212 = vadd.f32 %v1111, %v1180
        %v1213 = vadd.f32 %v1112, %v1181
        %v1214 = vadd.f32 %v1113, %v1182
        %v1215 = vadd.f32 %v1114, %v1183
        %v1216 = vadd.f32 %v1115, %v1184
        %v1217 = vadd.f32 %v1116, %v1185
        %v1218 = vadd.f32 %v1117, %v1186
        %v1219 = vadd.f32 %v1118, %v1187
        %v1220 = vadd.f32 %v1119, %v1188
        %v1221 = vadd.f32 %v1120, %v1189
        %v1222 = vadd.f32 %v1121, %v1190
        %v1223 = vadd.f32 %v1122, %v1191
        %v1224 = vadd.f32 %v1123, %v1192
        %v1225 = vadd.f32 %v1124, %v1193
        %v1226 = vadd.f32 %v1125, %v1194
        %v1227 = vadd.f32 %v1126, %v1195
        %v1228 = vadd.f32 %v1127, %v1196
        %v1229 = vadd.f32 %v1128, %v1197
        %v1230 = vadd.f32 %v1129, %v1198
        %v1231 = vadd.f32 %v1130, %v1199
        %v1232 = vadd.f32 %v1131, %v1200
        %v1233 = vadd.f32 %v1132, %v1201
        %v1234 = vadd.f32 %v1133, %v1202
        %v1235 = vadd.f32 %v1134, %v1203
        %v1236 = vadd.f32 %v1135, %v1204
        %v1237 = vadd.f32 %v1136, %v1205
        %v1238 = vld [vmem:[%s2] sm:$0xff]
        %v1239 = vld [vmem:[%s2 + $0x8] sm:$0xff]
        %v1240 = vld [vmem:[%s2 + $0x10] sm:$0xff]
        %v1241 = vld [vmem:[%s2 + $0x18] sm:$0xff]
        %v1242 = vld [vmem:[%s2 + $0x20] sm:$0xff]
        %v1243 = vld [vmem:[%s2 + $0x28] sm:$0xff]
        %v1244 = vld [vmem:[%s2 + $0x30] sm:$0xff]
        %v1245 = vld [vmem:[%s2 + $0x38] sm:$0xff]
        %v1246 = vld [vmem:[%s2 + $0x40] sm:$0xff]
        %v1247 = vld [vmem:[%s2 + $0x48] sm:$0xff]
        %v1248 = vld [vmem:[%s2 + $0x50] sm:$0xff]
        %v1249 = vld [vmem:[%s2 + $0x58] sm:$0xff]
        %v1250 = vld [vmem:[%s2 + $0x60] sm:$0xff]
        %v1251 = vld [vmem:[%s2 + $0x68] sm:$0xff]
        %v1252 = vld [vmem:[%s2 + $0x70] sm:$0xff]
        %v1253 = vld [vmem:[%s2 + $0x78] sm:$0xff]
        %1254 = vmatprep.subr.mxu0 0.0
        %1255 = vmatpush1.msra.mxu0 %v1238
        %1256 = vmatprep.subr.mxu0 0.0
        %1257 = vmatpush1.msra.mxu0 %v1239
        %1258 = vmatprep.subr.mxu0 0.0
        %1259 = vmatpush1.msra.mxu0 %v1240
        %1260 = vmatprep.subr.mxu0 0.0
        %1261 = vmatpush1.msra.mxu0 %v1241
        %1262 = vmatprep.subr.mxu0 0.0
        %1263 = vmatpush1.msra.mxu0 %v1242
        %1264 = vmatprep.subr.mxu0 0.0
        %1265 = vmatpush1.msra.mxu0 %v1243
        %1266 = vmatprep.subr.mxu0 0.0
        %1267 = vmatpush1.msra.mxu0 %v1244
        %1268 = vmatprep.subr.mxu0 0.0
        %1269 = vmatpush1.msra.mxu0 %v1245
        %1270 = vmatprep.subr.mxu0 0.0
        %1271 = vmatpush1.msra.mxu0 %v1246
        %1272 = vmatprep.subr.mxu0 0.0
        %1273 = vmatpush1.msra.mxu0 %v1247
        %1274 = vmatprep.subr.mxu0 0.0
        %1275 = vmatpush1.msra.mxu0 %v1248
        %1276 = vmatprep.subr.mxu0 0.0
        %1277 = vmatpush1.msra.mxu0 %v1249
        %1278 = vmatprep.subr.mxu0 0.0
        %1279 = vmatpush1.msra.mxu0 %v1250
        %1280 = vmatprep.subr.mxu0 0.0
        %1281 = vmatpush1.msra.mxu0 %v1251
        %1282 = vmatprep.subr.mxu0 0.0
        %1283 = vmatpush1.msra.mxu0 %v1252
        %1284 = vmatprep.subr.mxu0 0.0
        %1285 = vmatpush1.msra.mxu0 %v1253
        %1286 = vmatprep.subr.mxu0 0.0
        %1287 = vmatpush1.msra.mxu0 0.0
        %1288 = vmatprep.subr.mxu0 0.0
        %1289 = vmatpush1.msra.mxu0 0.0
        %1290 = vmatprep.subr.mxu0 0.0
        %1291 = vmatpush1.msra.mxu0 0.0
        %1292 = vmatprep.subr.mxu0 0.0
        %1293 = vmatpush1.msra.mxu0 0.0
        %1294 = vmatprep.subr.mxu0 0.0
        %1295 = vmatpush1.msra.mxu0 0.0
        %1296 = vmatprep.subr.mxu0 0.0
        %1297 = vmatpush1.msra.mxu0 0.0
        %1298 = vmatprep.subr.mxu0 0.0
        %1299 = vmatpush1.msra.mxu0 0.0
        %1300 = vmatprep.subr.mxu0 0.0
        %1301 = vmatpush1.msra.mxu0 0.0
        %1302 = vmatprep.subr.mxu0 0.0
        %1303 = vmatpush1.msra.mxu0 0.0
        %1304 = vmatprep.subr.mxu0 0.0
        %1305 = vmatpush1.msra.mxu0 0.0
        %1306 = vmatprep.subr.mxu0 0.0
        %1307 = vmatpush1.msra.mxu0 0.0
        %1308 = vmatprep.subr.mxu0 0.0
        %1309 = vmatpush1.msra.mxu0 0.0
        %1310 = vmatprep.subr.mxu0 0.0
        %1311 = vmatpush1.msra.mxu0 0.0
        %1312 = vmatprep.subr.mxu0 0.0
        %1313 = vmatpush1.msra.mxu0 0.0
        %1314 = vmatprep.subr.mxu0 0.0
        %1315 = vmatpush1.msra.mxu0 0.0
        %1316 = vmatprep.subr.mxu0 0.0
        %1317 = vmatpush1.msra.mxu0 0.0
        %1318 = vmatprep.mubr.f32.mxu0 0.0
        %1319 = vmatmul.mubr.f32.gmra.mrb[0].mxu0 %v1206
        %v1320 = vpop.f32.mrb[0].mxu0
        %v1321 = vadd.f32 0.0, %v1320
        %v1322 = vpop.f32.mrb[0].mxu0
        %1323 = vmatprep.mubr.f32.mxu0 0.0
        %1324 = vmatmul.mubr.f32.gmra.mrb[0].mxu0 %v1207
        %v1325 = vpop.f32.mrb[0].mxu0
        %v1326 = vadd.f32 0.0, %v1325
        %v1327 = vpop.f32.mrb[0].mxu0
        %1328 = vmatprep.mubr.f32.mxu0 0.0
        %1329 = vmatmul.mubr.f32.gmra.mrb[0].mxu0 %v1208
        %v1330 = vpop.f32.mrb[0].mxu0
        %v1331 = vadd.f32 0.0, %v1330
        %v1332 = vpop.f32.mrb[0].mxu0
        %1333 = vmatprep.mubr.f32.mxu0 0.0
        %1334 = vmatmul.mubr.f32.gmra.mrb[0].mxu0 %v1209
        %v1335 = vpop.f32.mrb[0].mxu0
        %v1336 = vadd.f32 0.0, %v1335
        %v1337 = vpop.f32.mrb[0].mxu0
        %1338 = vmatprep.mubr.f32.mxu0 0.0
        %1339 = vmatmul.mubr.f32.gmra.mrb[0].mxu0 %v1210
        %v1340 = vpop.f32.mrb[0].mxu0
        %v1341 = vadd.f32 0.0, %v1340
        %v1342 = vpop.f32.mrb[0].mxu0
        %1343 = vmatprep.mubr.f32.mxu0 0.0
        %1344 = vmatmul.mubr.f32.gmra.mrb[0].mxu0 %v1211
        %v1345 = vpop.f32.mrb[0].mxu0
        %v1346 = vadd.f32 0.0, %v1345
        %v1347 = vpop.f32.mrb[0].mxu0
        %1348 = vmatprep.mubr.f32.mxu0 0.0
        %1349 = vmatmul.mubr.f32.gmra.mrb[0].mxu0 %v1212
        %v1350 = vpop.f32.mrb[0].mxu0
        %v1351 = vadd.f32 0.0, %v1350
        %v1352 = vpop.f32.mrb[0].mxu0
        %1353 = vmatprep.mubr.f32.mxu0 0.0
        %1354 = vmatmul.mubr.f32.gmra.mrb[0].mxu0 %v1213
        %v1355 = vpop.f32.mrb[0].mxu0
        %v1356 = vadd.f32 0.0, %v1355
        %v1357 = vpop.f32.mrb[0].mxu0
        %1358 = vmatprep.mubr.f32.mxu0 0.0
        %1359 = vmatmul.mubr.f32.gmra.mrb[0].mxu0 %v1214
        %v1360 = vpop.f32.mrb[0].mxu0
        %v1361 = vadd.f32 0.0, %v1360
        %v1362 = vpop.f32.mrb[0].mxu0
        %1363 = vmatprep.mubr.f32.mxu0 0.0
        %1364 = vmatmul.mubr.f32.gmra.mrb[0].mxu0 %v1215
        %v1365 = vpop.f32.mrb[0].mxu0
        %v1366 = vadd.f32 0.0, %v1365
        %v1367 = vpop.f32.mrb[0].mxu0
        %1368 = vmatprep.mubr.f32.mxu0 0.0
        %1369 = vmatmul.mubr.f32.gmra.mrb[0].mxu0 %v1216
        %v1370 = vpop.f32.mrb[0].mxu0
        %v1371 = vadd.f32 0.0, %v1370
        %v1372 = vpop.f32.mrb[0].mxu0
        %1373 = vmatprep.mubr.f32.mxu0 0.0
        %1374 = vmatmul.mubr.f32.gmra.mrb[0].mxu0 %v1217
        %v1375 = vpop.f32.mrb[0].mxu0
        %v1376 = vadd.f32 0.0, %v1375
        %v1377 = vpop.f32.mrb[0].mxu0
        %1378 = vmatprep.mubr.f32.mxu0 0.0
        %1379 = vmatmul.mubr.f32.gmra.mrb[0].mxu0 %v1218
        %v1380 = vpop.f32.mrb[0].mxu0
        %v1381 = vadd.f32 0.0, %v1380
        %v1382 = vpop.f32.mrb[0].mxu0
        %1383 = vmatprep.mubr.f32.mxu0 0.0
        %1384 = vmatmul.mubr.f32.gmra.mrb[0].mxu0 %v1219
        %v1385 = vpop.f32.mrb[0].mxu0
        %v1386 = vadd.f32 0.0, %v1385
        %v1387 = vpop.f32.mrb[0].mxu0
        %1388 = vmatprep.mubr.f32.mxu0 0.0
        %1389 = vmatmul.mubr.f32.gmra.mrb[0].mxu0 %v1220
        %v1390 = vpop.f32.mrb[0].mxu0
        %v1391 = vadd.f32 0.0, %v1390
        %v1392 = vpop.f32.mrb[0].mxu0
        %1393 = vmatprep.mubr.f32.mxu0 0.0
        %1394 = vmatmul.mubr.f32.gmra.mrb[0].mxu0 %v1221
        %v1395 = vpop.f32.mrb[0].mxu0
        %v1396 = vadd.f32 0.0, %v1395
        %v1397 = vpop.f32.mrb[0].mxu0
        %1398 = vmatprep.mubr.f32.mxu0 0.0
        %1399 = vmatmul.mubr.f32.gmra.mrb[0].mxu0 %v1222
        %v1400 = vpop.f32.mrb[0].mxu0
        %v1401 = vadd.f32 0.0, %v1400
        %v1402 = vpop.f32.mrb[0].mxu0
        %1403 = vmatprep.mubr.f32.mxu0 0.0
        %1404 = vmatmul.mubr.f32.gmra.mrb[0].mxu0 %v1223
        %v1405 = vpop.f32.mrb[0].mxu0
        %v1406 = vadd.f32 0.0, %v1405
        %v1407 = vpop.f32.mrb[0].mxu0
        %1408 = vmatprep.mubr.f32.mxu0 0.0
        %1409 = vmatmul.mubr.f32.gmra.mrb[0].mxu0 %v1224
        %v1410 = vpop.f32.mrb[0].mxu0
        %v1411 = vadd.f32 0.0, %v1410
        %v1412 = vpop.f32.mrb[0].mxu0
        %1413 = vmatprep.mubr.f32.mxu0 0.0
        %1414 = vmatmul.mubr.f32.gmra.mrb[0].mxu0 %v1225
        %v1415 = vpop.f32.mrb[0].mxu0
        %v1416 = vadd.f32 0.0, %v1415
        %v1417 = vpop.f32.mrb[0].mxu0
        %1418 = vmatprep.mubr.f32.mxu0 0.0
        %1419 = vmatmul.mubr.f32.gmra.mrb[0].mxu0 %v1226
        %v1420 = vpop.f32.mrb[0].mxu0
        %v1421 = vadd.f32 0.0, %v1420
        %v1422 = vpop.f32.mrb[0].mxu0
        %1423 = vmatprep.mubr.f32.mxu0 0.0
        %1424 = vmatmul.mubr.f32.gmra.mrb[0].mxu0 %v1227
        %v1425 = vpop.f32.mrb[0].mxu0
        %v1426 = vadd.f32 0.0, %v1425
        %v1427 = vpop.f32.mrb[0].mxu0
        %1428 = vmatprep.mubr.f32.mxu0 0.0
        %1429 = vmatmul.mubr.f32.gmra.mrb[0].mxu0 %v1228
        %v1430 = vpop.f32.mrb[0].mxu0
        %v1431 = vadd.f32 0.0, %v1430
        %v1432 = vpop.f32.mrb[0].mxu0
        %1433 = vmatprep.mubr.f32.mxu0 0.0
        %1434 = vmatmul.mubr.f32.gmra.mrb[0].mxu0 %v1229
        %v1435 = vpop.f32.mrb[0].mxu0
        %v1436 = vadd.f32 0.0, %v1435
        %v1437 = vpop.f32.mrb[0].mxu0
        %1438 = vmatprep.mubr.f32.mxu0 0.0
        %1439 = vmatmul.mubr.f32.gmra.mrb[0].mxu0 %v1230
        %v1440 = vpop.f32.mrb[0].mxu0
        %v1441 = vadd.f32 0.0, %v1440
        %v1442 = vpop.f32.mrb[0].mxu0
        %1443 = vmatprep.mubr.f32.mxu0 0.0
        %1444 = vmatmul.mubr.f32.gmra.mrb[0].mxu0 %v1231
        %v1445 = vpop.f32.mrb[0].mxu0
        %v1446 = vadd.f32 0.0, %v1445
        %v1447 = vpop.f32.mrb[0].mxu0
        %1448 = vmatprep.mubr.f32.mxu0 0.0
        %1449 = vmatmul.mubr.f32.gmra.mrb[0].mxu0 %v1232
        %v1450 = vpop.f32.mrb[0].mxu0
        %v1451 = vadd.f32 0.0, %v1450
        %v1452 = vpop.f32.mrb[0].mxu0
        %1453 = vmatprep.mubr.f32.mxu0 0.0
        %1454 = vmatmul.mubr.f32.gmra.mrb[0].mxu0 %v1233
        %v1455 = vpop.f32.mrb[0].mxu0
        %v1456 = vadd.f32 0.0, %v1455
        %v1457 = vpop.f32.mrb[0].mxu0
        %1458 = vmatprep.mubr.f32.mxu0 0.0
        %1459 = vmatmul.mubr.f32.gmra.mrb[0].mxu0 %v1234
        %v1460 = vpop.f32.mrb[0].mxu0
        %v1461 = vadd.f32 0.0, %v1460
        %v1462 = vpop.f32.mrb[0].mxu0
        %1463 = vmatprep.mubr.f32.mxu0 0.0
        %1464 = vmatmul.mubr.f32.gmra.mrb[0].mxu0 %v1235
        %v1465 = vpop.f32.mrb[0].mxu0
        %v1466 = vadd.f32 0.0, %v1465
        %v1467 = vpop.f32.mrb[0].mxu0
        %1468 = vmatprep.mubr.f32.mxu0 0.0
        %1469 = vmatmul.mubr.f32.gmra.mrb[0].mxu0 %v1236
        %v1470 = vpop.f32.mrb[0].mxu0
        %v1471 = vadd.f32 0.0, %v1470
        %v1472 = vpop.f32.mrb[0].mxu0
        %1473 = vmatprep.mubr.f32.mxu0 0.0
        %1474 = vmatmul.mubr.f32.gmra.mrb[0].mxu0 %v1237
        %v1475 = vpop.f32.mrb[0].mxu0
        %v1476 = vadd.f32 0.0, %v1475
        %v1477 = vpop.f32.mrb[0].mxu0
        %1478 = vdwg.mxu0
        %1479 = vst [vmem:[%s136] sm:$0xff] %v1321
        %1480 = vst [vmem:[%s136 + $0x8] sm:$0xff] %v1326
        %1481 = vst [vmem:[%s136 + $0x10] sm:$0xff] %v1331
        %1482 = vst [vmem:[%s136 + $0x18] sm:$0xff] %v1336
        %1483 = vst [vmem:[%s136 + $0x20] sm:$0xff] %v1341
        %1484 = vst [vmem:[%s136 + $0x28] sm:$0xff] %v1346
        %1485 = vst [vmem:[%s136 + $0x30] sm:$0xff] %v1351
        %1486 = vst [vmem:[%s136 + $0x38] sm:$0xff] %v1356
        %1487 = vst [vmem:[%s136 + $0x40] sm:$0xff] %v1361
        %1488 = vst [vmem:[%s136 + $0x48] sm:$0xff] %v1366
        %1489 = vst [vmem:[%s136 + $0x50] sm:$0xff] %v1371
        %1490 = vst [vmem:[%s136 + $0x58] sm:$0xff] %v1376
        %1491 = vst [vmem:[%s136 + $0x60] sm:$0xff] %v1381
        %1492 = vst [vmem:[%s136 + $0x68] sm:$0xff] %v1386
        %1493 = vst [vmem:[%s136 + $0x70] sm:$0xff] %v1391
        %1494 = vst [vmem:[%s136 + $0x78] sm:$0xff] %v1396
        %1495 = vst [vmem:[%s136 + $0x80] sm:$0xff] %v1401
        %1496 = vst [vmem:[%s136 + $0x88] sm:$0xff] %v1406
        %1497 = vst [vmem:[%s136 + $0x90] sm:$0xff] %v1411
        %1498 = vst [vmem:[%s136 + $0x98] sm:$0xff] %v1416
        %1499 = vst [vmem:[%s136 + $0xa0] sm:$0xff] %v1421
        %1500 = vst [vmem:[%s136 + $0xa8] sm:$0xff] %v1426
        %1501 = vst [vmem:[%s136 + $0xb0] sm:$0xff] %v1431
        %1502 = vst [vmem:[%s136 + $0xb8] sm:$0xff] %v1436
        %1503 = vst [vmem:[%s136 + $0xc0] sm:$0xff] %v1441
        %1504 = vst [vmem:[%s136 + $0xc8] sm:$0xff] %v1446
        %1505 = vst [vmem:[%s136 + $0xd0] sm:$0xff] %v1451
        %1506 = vst [vmem:[%s136 + $0xd8] sm:$0xff] %v1456
        %1507 = vst [vmem:[%s136 + $0xe0] sm:$0xff] %v1461
        %1508 = vst [vmem:[%s136 + $0xe8] sm:$0xff] %v1466
        %1509 = vst [vmem:[%s136 + $0xf0] sm:$0xff] %v1471
        %1510 = vst [vmem:[%s136 + $0xf8] sm:$0xff] %v1476
        %s1511 = sand.u32 %s81, 1
        %s1512 = scalar_lea.sflag [#allocation5], %s1511
        %s1513 = sand.u32 %s81, 1
        %s1514 = smul.addr %s1513, 256
        %s1515 = scalar_lea.vmem [#allocation4], %s1514
        // Predicated region
        $region70: #{tpu_custom_call.1} parent=27 // pred_check
          %p1516 = pneg %p91
        $region71: #{tpu_custom_call.1} parent=27 // pred_check_branch
          %1518 = sbr.rel (%p1516) target = $region73
        $region72: #{tpu_custom_call.1} parent=27 // pred_region
          %s1519 = smul.u32 16, %s22
          %s1521 = ssub.s32 4096, 4096
          %1522 = vsyncadd %s1512, %s1521
          %s1523 = smul.addr %s1519, 2
          %s1524 = smul.addr %s21, 32
          %s1525 = sadd.s32 %s1523, %s1524
          %s1526 = smul.addr %s1525, 128
          %s1527 = scalar_lea.hbm %s3, %s1526
          %s1528 = sshll.u32 %s1515, 4
          %s1529 = int_to_ptr.vmem [resolvable:$true] %s1528
          %1534 = dma.vmem_to_hbm [thread:$0]  %s1529, 4096, %s1527, %s1512, 128, 128, 8
        $region73: #{tpu_custom_call.1} parent=27 // pred_fallthru
          _
      $region28: #{tpu_custom_call.1} parent=5 // pred_fallthru
        _
      %p1535 = scmp.le.s32.totalorder 2, %s12
      // Predicated region
      $region74: #{tpu_custom_call.1} parent=5 // pred_check
        %p1536 = pneg %p1535
      $region75: #{tpu_custom_call.1} parent=5 // pred_check_branch
        %1538 = sbr.rel (%p1536) target = $region77
      $region76: #{tpu_custom_call.1} parent=5 // pred_region
        %s1539 = ssub.s32 %s12, 2
        // Predicated region
        $region78: #{tpu_custom_call.1} parent=76 // pred_check
          %p1540 = pneg %p97
        $region79: #{tpu_custom_call.1} parent=76 // pred_check_branch
          %1542 = sbr.rel (%p1540) target = $region81
        $region80: #{tpu_custom_call.1} parent=76 // pred_region
          %s1543 = sand.u32 %s82, 1
          %s1544 = scalar_lea.sflag [#allocation5], %s1543
          %s1545 = sand.u32 %s82, 1
          %s1546 = smul.addr %s1545, 256
          %s1547 = scalar_lea.vmem [#allocation4], %s1546
          %1548 = dma.done %s1544, 4096
        $region81: #{tpu_custom_call.1} parent=76 // pred_fallthru
          _
      $region77: #{tpu_custom_call.1} parent=5 // pred_fallthru
        _
    $region6: #{tpu_custom_call.1} parent=1 // loop_footer
      %s16 = sadd.s32 1, %s12
    $region7: #{tpu_custom_call.1} parent=1 // loop_footer_branch
      %11 = sbr.rel target = $region3
    $region8: #{tpu_custom_call.1} parent=1 // loop_exit
      _
    %1549 = vsyncpa [#allocation5], 1
    %s1550 = scalar_lea.sflag [#allocation5], 1
    %1551 = vsyncpa %s1550, 1
  %1552 = vsyncmov [#allocation3]
  %s1553 = vpop.sfrf %1552
  %p1554 = scmp.eq.s32.totalorder %s1553, 0
  %p1555 = pneg %p1554
  %1557 = shalt.err (%p1555)
  %s1558 = scalar_lea.sflag [#allocation3], 1
  %1559 = vsyncmov %s1558
  %s1560 = vpop.sfrf %1559
  %p1561 = scmp.eq.s32.totalorder %s1560, 0
  %p1562 = pneg %p1561
  %1564 = shalt.err (%p1562)

</llo_original>
